<compile_context>
chip_gen: v6e
topology: v6e:2x2x1
jax: 0.10.0
libtpu: 0.0.40
codegen_flags: <defaults>
</compile_context>

<pallas_src>
import functools

import jax
import jax.numpy as jnp
from jax import lax
from jax.experimental import pallas as pl
from jax.experimental.pallas import tpu as pltpu


# --------------------------------------------------------------------------
# Kernel
# --------------------------------------------------------------------------
def make_conv_lstm_kernel(num_layers: int, T: int, B: int, H: int):
    """Fused kernel: Conv1d(k=3,p=1) -> num_layers LSTM -> FC -> ReLU."""

    def kernel(*refs):
        # inputs : x, conv_w, conv_b, [w_ih, w_hh, bias] * num_layers, fc_w, fc_b
        # outputs: out
        # scratch: seq (S, T, B, H) f32 ping-pong, gx (T, B, 4H) f32 hoisted gates
        x_ref, wc_ref, bc_ref = refs[0], refs[1], refs[2]
        lstm_refs = refs[3 : 3 + 3 * num_layers]
        w_fc_ref, b_fc_ref, out_ref, seq, gx = refs[3 + 3 * num_layers :]

        cin = x_ref.shape[-1]

        # ---------- Conv1d (k=3, p=1): one fused (T*B, Cin) @ (Cin, 3H) matmul ----
        x2 = x_ref[...].reshape(T * B, cin).astype(jnp.bfloat16)
        y = jnp.dot(x2, wc_ref[...], preferred_element_type=jnp.float32)
        y = y.reshape(T, B, 3 * H)
        y0 = y[:, :, 0 * H : 1 * H]          # tap 0 -> multiplies x[t-1]
        y1 = y[:, :, 1 * H : 2 * H]          # tap 1 -> multiplies x[t]
        y2 = y[:, :, 2 * H : 3 * H]          # tap 2 -> multiplies x[t+1]
        zpad = jnp.zeros((1, B, H), jnp.float32)
        # out[t] = y0[t-1] + y1[t] + y2[t+1] + b
        seq[0] = (
            jnp.concatenate([zpad, y0[:-1]], axis=0)
            + y1
            + jnp.concatenate([y2[1:], zpad], axis=0)
            + bc_ref[...]
        )

        # ---------- Stacked LSTM layers (PyTorch gate order i,f,g,o) --------------
        h_last = jnp.zeros((B, H), jnp.float32)
        for l in range(num_layers):
            src = l % 2
            dst = (l + 1) % 2
            last_layer = l == num_layers - 1
            w_ih = lstm_refs[3 * l + 0][...]          # (H, 4H) bf16
            w_hh = lstm_refs[3 * l + 1][...]          # (H, 4H) bf16
            bias = lstm_refs[3 * l + 2][...]          # (1, 4H) f32 (b_ih + b_hh)

            # Hoisted input-side gate matmul: one large MXU op per layer instead
            # of T tiny ones inside the serialized recurrence.
            layer_in = seq[src].reshape(T * B, H).astype(jnp.bfloat16)
            gx[...] = (
                jnp.dot(layer_in, w_ih, preferred_element_type=jnp.float32) + bias
            ).reshape(T, B, 4 * H)

            def step(t, carry, dst=dst, w_hh=w_hh, last_layer=last_layer):
                h, c = carry
                gates = gx[t] + jnp.dot(
                    h.astype(jnp.bfloat16), w_hh, preferred_element_type=jnp.float32
                )
                # Lane-dense nonlinearities over the full (B, 4H) tile, then slice.
                sig = jax.nn.sigmoid(gates)
                th = jnp.tanh(gates)
                i_g = sig[:, 0 * H : 1 * H]
                f_g = sig[:, 1 * H : 2 * H]
                g_g = th[:, 2 * H : 3 * H]
                o_g = sig[:, 3 * H : 4 * H]
                c = f_g * c + i_g * g_g
                h = o_g * jnp.tanh(c)
                if not last_layer:  # last layer's output sequence is never read
                    seq[dst, t] = h
                return h, c

            h0 = jnp.zeros((B, H), jnp.float32)
            c0 = jnp.zeros((B, H), jnp.float32)
            # T is small & static: full unroll gives the LLO scheduler visibility.
            h_last, _ = lax.fori_loop(0, T, step, (h0, c0), unroll=True)

        # TODO(synk): a layer-wavefront schedule (layer l at step t while layer l+1
        # runs step t-1) would add num_layers-way ILP to the latency-bound recurrence.

        # ---------- FC on last time step + Dropout(identity) + ReLU ---------------
        # TODO(synk): dropout is implemented as inference-mode identity (no RNG mask).
        pred = (
            jnp.dot(h_last.astype(jnp.bfloat16), w_fc_ref[...],
                    preferred_element_type=jnp.float32)
            + b_fc_ref[...]
        )
        out_ref[...] = jnp.maximum(pred, 0.0).astype(out_ref.dtype)

    return kernel


# --------------------------------------------------------------------------
# Wrapper
# --------------------------------------------------------------------------
def _padded_vmem_bytes(shape, dtype):
    """Rough per-array VMEM footprint with (sublane, lane) tile padding."""
    itemsize = jnp.dtype(dtype).itemsize
    dims = list(shape)
    if len(dims) == 0:
        dims = [1, 1]
    elif len(dims) == 1:
        dims = [1, dims[0]]
    sublane = 8 * max(1, 4 // itemsize)
    dims[-2] = -(-dims[-2] // sublane) * sublane
    dims[-1] = -(-dims[-1] // 128) * 128
    total = itemsize
    for d in dims:
        total *= int(d)
    return total


def conv_lstm_forward(x_btc, params, *, num_layers):
    """x_btc: (B, T, input_size) float32  ->  (B, output_size) float32."""
    B, T, Cin = x_btc.shape
    H = params["conv_w"].shape[-1]
    O = params["fc_w"].shape[-1]

    # Time-major, and pad batch to a sublane multiple so per-step tiles are unmasked.
    B_pad = ((B + 7) // 8) * 8
    x_tbc = jnp.transpose(x_btc, (1, 0, 2))
    if B_pad != B:
        x_tbc = jnp.pad(x_tbc, ((0, 0), (0, B_pad - B), (0, 0)))

    # Fuse the 3 conv taps into one (Cin, 3H) weight; bf16 matmul operands.
    wc = jnp.concatenate(
        [params["conv_w"][0], params["conv_w"][1], params["conv_w"][2]], axis=-1
    ).astype(jnp.bfloat16)

    inputs = [x_tbc, wc, params["conv_b"]]
    for l in range(num_layers):
        inputs += [
            params[f"w_ih_{l}"].astype(jnp.bfloat16),
            params[f"w_hh_{l}"].astype(jnp.bfloat16),
            params[f"b_ih_{l}"] + params[f"b_hh_{l}"],  # fused gate bias
        ]
    inputs += [params["fc_w"].astype(jnp.bfloat16), params["fc_b"]]

    seq_slots = 2 if num_layers > 1 else 1
    scratch_shapes = [
        pltpu.VMEM((seq_slots, T, B_pad, H), jnp.float32),  # layer ping-pong sequence
        pltpu.VMEM((T, B_pad, 4 * H), jnp.float32),         # hoisted input-side gates
    ]
    # TODO(synk): for production shapes on v7x (64 MiB VMEM), keep seq in bf16 or
    # stream x/seq from HBM with pltpu.make_async_copy; unnecessary at these sizes.

    # VMEM budget sized to the actual resident set + cost estimate for the scheduler.
    resident = sum(_padded_vmem_bytes(a.shape, a.dtype) for a in inputs)
    resident += _padded_vmem_bytes((B_pad, O), jnp.float32)
    resident += _padded_vmem_bytes((seq_slots, T, B_pad, H), jnp.float32)
    resident += _padded_vmem_bytes((T, B_pad, 4 * H), jnp.float32)
    vmem_limit = int(min(60 * 2**20, max(16 * 2**20, 2 * resident + (2 << 20))))

    flops = (
        2 * T * B_pad * Cin * 3 * H
        + num_layers * (4 * T * B_pad * H * 4 * H + 12 * T * B_pad * H)
        + 2 * B_pad * H * O
    )
    transcendentals = num_layers * T * B_pad * 9 * H
    bytes_accessed = int(
        sum(a.size * a.dtype.itemsize for a in inputs) + B_pad * O * 4
    )

    vmem_spec = pl.BlockSpec(memory_space=pltpu.MemorySpace.VMEM)
    out = pl.pallas_call(
        make_conv_lstm_kernel(num_layers, T, B_pad, H),
        out_shape=jax.ShapeDtypeStruct((B_pad, O), jnp.float32),
        in_specs=[vmem_spec] * len(inputs),
        out_specs=vmem_spec,
        scratch_shapes=scratch_shapes,
        compiler_params=pltpu.CompilerParams(vmem_limit_bytes=vmem_limit),
        cost_estimate=pl.CostEstimate(
            flops=int(flops),
            transcendentals=int(transcendentals),
            bytes_accessed=bytes_accessed,
        ),
    )(*inputs)
    # TODO(synk): with a larger batch, add a grid over B with
    # dimension_semantics=("parallel",) to use both TensorCores on v7x.
    return out[:B]


# --------------------------------------------------------------------------
# Deterministic parameter init (mirrors the nn.Module's shapes)
# --------------------------------------------------------------------------
def init_params(key, input_size, hidden_size, num_layers, output_size):
    H = hidden_size
    params = {}
    n_keys = 3 + 4 * num_layers + 2
    keys = jax.random.split(key, n_keys)
    ki = iter(keys)

    def u(k, shape, fan_in):
        bound = 1.0 / jnp.sqrt(jnp.float32(fan_in))
        return jax.random.uniform(k, shape, jnp.float32, -bound, bound)

    # Conv1d weight (H, Cin, 3) in torch -> stored as (3, Cin, H)
    conv_w_torch = u(next(ki), (H, input_size, 3), input_size * 3)
    params["conv_w"] = jnp.transpose(conv_w_torch, (2, 1, 0))
    params["conv_b"] = u(next(ki), (1, H), input_size * 3)

    for l in range(num_layers):
        in_dim = H  # input to every LSTM layer is hidden_size in this model
        # torch weight_ih (4H, in) -> (in, 4H); weight_hh (4H, H) -> (H, 4H)
        params[f"w_ih_{l}"] = jnp.transpose(u(next(ki), (4 * H, in_dim), H), (1, 0))
        params[f"w_hh_{l}"] = jnp.transpose(u(next(ki), (4 * H, H), H), (1, 0))
        params[f"b_ih_{l}"] = u(next(ki), (1, 4 * H), H)
        params[f"b_hh_{l}"] = u(next(ki), (1, 4 * H), H)

    # Linear weight (O, H) in torch -> stored as (H, O)
    params["fc_w"] = jnp.transpose(u(next(ki), (output_size, H), H), (1, 0))
    params["fc_b"] = u(next(ki), (1, output_size), H)
    return params


# --------------------------------------------------------------------------
# Pure-JAX reference (f32, for a correctness sanity check)
# --------------------------------------------------------------------------
def reference_forward(x_btc, params, *, num_layers):
    B, T, _ = x_btc.shape
    H = params["conv_w"].shape[-1]
    wc, bc = params["conv_w"], params["conv_b"]
    # Conv1d, kernel=3, pad=1
    y = jnp.einsum("btc,ch->bth", x_btc, wc[1])
    y_prev = jnp.einsum("btc,ch->bth", x_btc, wc[0])
    y_next = jnp.einsum("btc,ch->bth", x_btc, wc[2])
    z = jnp.zeros((B, 1, H), jnp.float32)
    seq = (
        jnp.concatenate([z, y_prev[:, :-1]], axis=1)
        + y
        + jnp.concatenate([y_next[:, 1:], z], axis=1)
        + bc
    )
    for l in range(num_layers):
        w_ih, w_hh = params[f"w_ih_{l}"], params[f"w_hh_{l}"]
        b = params[f"b_ih_{l}"] + params[f"b_hh_{l}"]

        def step(carry, x_t):
            h, c = carry
            g = x_t @ w_ih + h @ w_hh + b
            i_g = jax.nn.sigmoid(g[:, :H])
            f_g = jax.nn.sigmoid(g[:, H : 2 * H])
            g_g = jnp.tanh(g[:, 2 * H : 3 * H])
            o_g = jax.nn.sigmoid(g[:, 3 * H :])
            c = f_g * c + i_g * g_g
            h = o_g * jnp.tanh(c)
            return (h, c), h

        (h, _), outs = lax.scan(
            step,
            (jnp.zeros((B, H), jnp.float32), jnp.zeros((B, H), jnp.float32)),
            jnp.transpose(seq, (1, 0, 2)),
        )
        seq = jnp.transpose(outs, (1, 0, 2))
    pred = seq[:, -1, :] @ params["fc_w"] + params["fc_b"]
    return jnp.maximum(pred, 0.0)


# --------------------------------------------------------------------------
if __name__ == "__main__":
    # Small shapes consistent with the module's forward contract.
    B, T = 2, 8
    input_size, hidden_size, num_layers, output_size = 4, 32, 2, 4

    key = jax.random.PRNGKey(0)
    k_x, k_p = jax.random.split(key)
    x = jax.random.normal(k_x, (B, T, input_size), jnp.float32)
    params = init_params(k_p, input_size, hidden_size, num_layers, output_size)

    fwd = jax.jit(functools.partial(conv_lstm_forward, num_layers=num_layers))
    out = jax.block_until_ready(fwd(x, params))

    ref = reference_forward(x, params, num_layers=num_layers)
    assert out.shape == (B, output_size), out.shape
    # bf16 matmul operands (f32 accumulation) -> relaxed tolerance vs f32 reference.
    assert jnp.allclose(out, ref, rtol=2e-2, atol=2e-2), (out, ref)

    print("KERNEL_OK")
</pallas_src>

<mosaic_0001>
module attributes {stable_mosaic.version = 11 : i64} {
  func.func @kernel(%arg0: memref<8x8x4xf32, #tpu.memory_space<vmem>>, %arg1: memref<4x96xbf16, #tpu.memory_space<vmem>>, %arg2: memref<1x32xf32, #tpu.memory_space<vmem>>, %arg3: memref<32x128xbf16, #tpu.memory_space<vmem>>, %arg4: memref<32x128xbf16, #tpu.memory_space<vmem>>, %arg5: memref<1x128xf32, #tpu.memory_space<vmem>>, %arg6: memref<32x128xbf16, #tpu.memory_space<vmem>>, %arg7: memref<32x128xbf16, #tpu.memory_space<vmem>>, %arg8: memref<1x128xf32, #tpu.memory_space<vmem>>, %arg9: memref<32x4xbf16, #tpu.memory_space<vmem>>, %arg10: memref<1x4xf32, #tpu.memory_space<vmem>>, %arg11: memref<8x4xf32, #tpu.memory_space<vmem>>, %arg12: memref<2x8x8x32xf32, #tpu.memory_space<vmem>>, %arg13: memref<8x8x128xf32, #tpu.memory_space<vmem>>) attributes {dimension_semantics = [], scalar_prefetch = 0 : i64, scratch_operands = 2 : i64, tpu.core_type = #tpu.core_type<tc>} {
    %c0 = arith.constant 0 : index
    %c0_0 = arith.constant 0 : index
    %c0_1 = arith.constant 0 : index
    %0 = vector.load %arg0[%c0, %c0_0, %c0_1] : memref<8x8x4xf32, #tpu.memory_space<vmem>>, vector<8x8x4xf32>
    %1 = vector.shape_cast %0 : vector<8x8x4xf32> to vector<64x4xf32>
    %2 = arith.truncf %1 : vector<64x4xf32> to vector<64x4xbf16>
    %c0_2 = arith.constant 0 : index
    %c0_3 = arith.constant 0 : index
    %3 = vector.load %arg1[%c0_2, %c0_3] : memref<4x96xbf16, #tpu.memory_space<vmem>>, vector<4x96xbf16>
    %cst = arith.constant dense<0.000000e+00> : vector<64x96xf32>
    %4 = tpu.matmul %2, %3, %cst {dimension_numbers = #tpu.dot_dimension_numbers<[1], [0], [0], [1], [0, 0, 1, 1], [], []>} : vector<64x4xbf16>, vector<4x96xbf16>, vector<64x96xf32> -> vector<64x96xf32>
    %5 = vector.shape_cast %4 : vector<64x96xf32> to vector<8x8x96xf32>
    %6 = vector.extract_strided_slice %5 {offsets = [0, 0, 0], sizes = [8, 8, 32], strides = [1, 1, 1]} : vector<8x8x96xf32> to vector<8x8x32xf32>
    %7 = vector.extract_strided_slice %5 {offsets = [0, 0, 32], sizes = [8, 8, 32], strides = [1, 1, 1]} : vector<8x8x96xf32> to vector<8x8x32xf32>
    %8 = vector.extract_strided_slice %5 {offsets = [0, 0, 64], sizes = [8, 8, 32], strides = [1, 1, 1]} : vector<8x8x96xf32> to vector<8x8x32xf32>
    %cst_4 = arith.constant 0.000000e+00 : f32
    %9 = vector.broadcast %cst_4 : f32 to vector<1x8x32xf32>
    %10 = vector.extract_strided_slice %6 {offsets = [0, 0, 0], sizes = [7, 8, 32], strides = [1, 1, 1]} : vector<8x8x32xf32> to vector<7x8x32xf32>
    %11 = tpu.concatenate %9, %10 in 0 : vector<1x8x32xf32>, vector<7x8x32xf32> -> vector<8x8x32xf32>
    %12 = arith.addf %11, %7 : vector<8x8x32xf32>
    %13 = vector.extract_strided_slice %8 {offsets = [1, 0, 0], sizes = [7, 8, 32], strides = [1, 1, 1]} : vector<8x8x32xf32> to vector<7x8x32xf32>
    %14 = tpu.concatenate %13, %9 in 0 : vector<7x8x32xf32>, vector<1x8x32xf32> -> vector<8x8x32xf32>
    %15 = arith.addf %12, %14 : vector<8x8x32xf32>
    %c0_5 = arith.constant 0 : index
    %c0_6 = arith.constant 0 : index
    %16 = vector.load %arg2[%c0_5, %c0_6] : memref<1x32xf32, #tpu.memory_space<vmem>>, vector<1x32xf32>
    %17 = vector.shape_cast %16 : vector<1x32xf32> to vector<1x1x32xf32>
    %18 = vector.broadcast %17 : vector<1x1x32xf32> to vector<8x8x32xf32>
    %19 = arith.addf %15, %18 : vector<8x8x32xf32>
    %c0_7 = arith.constant 0 : index
    %c0_8 = arith.constant 0 : index
    %c0_9 = arith.constant 0 : index
    %c0_10 = arith.constant 0 : index
    %20 = vector.load %arg12[%c0_7, %c0_8, %c0_9, %c0_10] : memref<2x8x8x32xf32, #tpu.memory_space<vmem>>, vector<1x8x8x32xf32>
    %21 = vector.shape_cast %20 : vector<1x8x8x32xf32> to vector<8x8x32xf32>
    %22 = vector.shape_cast %19 : vector<8x8x32xf32> to vector<1x8x8x32xf32>
    tpu.vector_store %arg12[%c0_7, %c0_8, %c0_9, %c0_10], %22 {strides = array<i32>} : memref<2x8x8x32xf32, #tpu.memory_space<vmem>>, vector<1x8x8x32xf32>,
    %c0_11 = arith.constant 0 : index
    %c0_12 = arith.constant 0 : index
    %23 = vector.load %arg3[%c0_11, %c0_12] : memref<32x128xbf16, #tpu.memory_space<vmem>>, vector<32x128xbf16>
    %c0_13 = arith.constant 0 : index
    %c0_14 = arith.constant 0 : index
    %24 = vector.load %arg4[%c0_13, %c0_14] : memref<32x128xbf16, #tpu.memory_space<vmem>>, vector<32x128xbf16>
    %c0_15 = arith.constant 0 : index
    %c0_16 = arith.constant 0 : index
    %25 = vector.load %arg5[%c0_15, %c0_16] : memref<1x128xf32, #tpu.memory_space<vmem>>, vector<1x128xf32>
    %c0_17 = arith.constant 0 : index
    %c0_18 = arith.constant 0 : index
    %c0_19 = arith.constant 0 : index
    %c0_20 = arith.constant 0 : index
    %26 = vector.load %arg12[%c0_17, %c0_18, %c0_19, %c0_20] : memref<2x8x8x32xf32, #tpu.memory_space<vmem>>, vector<1x8x8x32xf32>
    %27 = vector.shape_cast %26 : vector<1x8x8x32xf32> to vector<8x8x32xf32>
    %28 = vector.shape_cast %27 : vector<8x8x32xf32> to vector<64x32xf32>
    %29 = arith.truncf %28 : vector<64x32xf32> to vector<64x32xbf16>
    %cst_21 = arith.constant dense<0.000000e+00> : vector<64x128xf32>
    %30 = tpu.matmul %29, %23, %cst_21 {dimension_numbers = #tpu.dot_dimension_numbers<[1], [0], [0], [1], [0, 0, 1, 1], [], []>} : vector<64x32xbf16>, vector<32x128xbf16>, vector<64x128xf32> -> vector<64x128xf32>
    %31 = vector.broadcast %25 : vector<1x128xf32> to vector<64x128xf32>
    %32 = arith.addf %30, %31 : vector<64x128xf32>
    %33 = vector.shape_cast %32 : vector<64x128xf32> to vector<8x8x128xf32>
    %c0_22 = arith.constant 0 : index
    %c0_23 = arith.constant 0 : index
    %c0_24 = arith.constant 0 : index
    %34 = vector.load %arg13[%c0_22, %c0_23, %c0_24] : memref<8x8x128xf32, #tpu.memory_space<vmem>>, vector<8x8x128xf32>
    tpu.vector_store %arg13[%c0_22, %c0_23, %c0_24], %33 {strides = array<i32>} : memref<8x8x128xf32, #tpu.memory_space<vmem>>, vector<8x8x128xf32>,
    %cst_25 = arith.constant 0.000000e+00 : f32
    %35 = vector.broadcast %cst_25 : f32 to vector<8x32xf32>
    %cst_26 = arith.constant 0.000000e+00 : f32
    %36 = vector.broadcast %cst_26 : f32 to vector<8x32xf32>
    %c0_i32 = arith.constant 0 : i32
    %37 = arith.index_cast %c0_i32 : i32 to index
    %c0_27 = arith.constant 0 : index
    %c0_28 = arith.constant 0 : index
    %38 = vector.load %arg13[%37, %c0_27, %c0_28] : memref<8x8x128xf32, #tpu.memory_space<vmem>>, vector<1x8x128xf32>
    %39 = vector.shape_cast %38 : vector<1x8x128xf32> to vector<8x128xf32>
    %40 = arith.truncf %35 : vector<8x32xf32> to vector<8x32xbf16>
    %cst_29 = arith.constant dense<0.000000e+00> : vector<8x128xf32>
    %41 = tpu.matmul %40, %24, %cst_29 {dimension_numbers = #tpu.dot_dimension_numbers<[1], [0], [0], [1], [0, 0, 1, 1], [], []>} : vector<8x32xbf16>, vector<32x128xbf16>, vector<8x128xf32> -> vector<8x128xf32>
    %42 = arith.addf %39, %41 : vector<8x128xf32>
    %43 = arith.negf %42 : vector<8x128xf32>
    %44 = math.exp %43 : vector<8x128xf32>
    %cst_30 = arith.constant 1.000000e+00 : f32
    %45 = vector.broadcast %cst_30 : f32 to vector<8x128xf32>
    %46 = arith.addf %45, %44 : vector<8x128xf32>
    %47 = arith.divf %45, %46 : vector<8x128xf32>
    %48 = math.tanh %42 : vector<8x128xf32>
    %49 = vector.extract_strided_slice %47 {offsets = [0, 0], sizes = [8, 32], strides = [1, 1]} : vector<8x128xf32> to vector<8x32xf32>
    %50 = vector.extract_strided_slice %47 {offsets = [0, 32], sizes = [8, 32], strides = [1, 1]} : vector<8x128xf32> to vector<8x32xf32>
    %51 = vector.extract_strided_slice %48 {offsets = [0, 64], sizes = [8, 32], strides = [1, 1]} : vector<8x128xf32> to vector<8x32xf32>
    %52 = vector.extract_strided_slice %47 {offsets = [0, 96], sizes = [8, 32], strides = [1, 1]} : vector<8x128xf32> to vector<8x32xf32>
    %53 = arith.mulf %50, %36 : vector<8x32xf32>
    %54 = arith.mulf %49, %51 : vector<8x32xf32>
    %55 = arith.addf %53, %54 : vector<8x32xf32>
    %56 = math.tanh %55 : vector<8x32xf32>
    %57 = arith.mulf %52, %56 : vector<8x32xf32>
    %c1 = arith.constant 1 : index
    %58 = arith.index_cast %c0_i32 : i32 to index
    %c0_31 = arith.constant 0 : index
    %c0_32 = arith.constant 0 : index
    %59 = vector.load %arg12[%c1, %58, %c0_31, %c0_32] : memref<2x8x8x32xf32, #tpu.memory_space<vmem>>, vector<1x1x8x32xf32>
    %60 = vector.shape_cast %59 : vector<1x1x8x32xf32> to vector<8x32xf32>
    %61 = vector.shape_cast %57 : vector<8x32xf32> to vector<1x1x8x32xf32>
    tpu.vector_store %arg12[%c1, %58, %c0_31, %c0_32], %61 {strides = array<i32>} : memref<2x8x8x32xf32, #tpu.memory_space<vmem>>, vector<1x1x8x32xf32>,
    %c1_i32 = arith.constant 1 : i32
    %62 = arith.index_cast %c1_i32 : i32 to index
    %c0_33 = arith.constant 0 : index
    %c0_34 = arith.constant 0 : index
    %63 = vector.load %arg13[%62, %c0_33, %c0_34] : memref<8x8x128xf32, #tpu.memory_space<vmem>>, vector<1x8x128xf32>
    %64 = vector.shape_cast %63 : vector<1x8x128xf32> to vector<8x128xf32>
    %65 = arith.truncf %57 : vector<8x32xf32> to vector<8x32xbf16>
    %cst_35 = arith.constant dense<0.000000e+00> : vector<8x128xf32>
    %66 = tpu.matmul %65, %24, %cst_35 {dimension_numbers = #tpu.dot_dimension_numbers<[1], [0], [0], [1], [0, 0, 1, 1], [], []>} : vector<8x32xbf16>, vector<32x128xbf16>, vector<8x128xf32> -> vector<8x128xf32>
    %67 = arith.addf %64, %66 : vector<8x128xf32>
    %68 = arith.negf %67 : vector<8x128xf32>
    %69 = math.exp %68 : vector<8x128xf32>
    %cst_36 = arith.constant 1.000000e+00 : f32
    %70 = vector.broadcast %cst_36 : f32 to vector<8x128xf32>
    %71 = arith.addf %70, %69 : vector<8x128xf32>
    %72 = arith.divf %70, %71 : vector<8x128xf32>
    %73 = math.tanh %67 : vector<8x128xf32>
    %74 = vector.extract_strided_slice %72 {offsets = [0, 0], sizes = [8, 32], strides = [1, 1]} : vector<8x128xf32> to vector<8x32xf32>
    %75 = vector.extract_strided_slice %72 {offsets = [0, 32], sizes = [8, 32], strides = [1, 1]} : vector<8x128xf32> to vector<8x32xf32>
    %76 = vector.extract_strided_slice %73 {offsets = [0, 64], sizes = [8, 32], strides = [1, 1]} : vector<8x128xf32> to vector<8x32xf32>
    %77 = vector.extract_strided_slice %72 {offsets = [0, 96], sizes = [8, 32], strides = [1, 1]} : vector<8x128xf32> to vector<8x32xf32>
    %78 = arith.mulf %75, %55 : vector<8x32xf32>
    %79 = arith.mulf %74, %76 : vector<8x32xf32>
    %80 = arith.addf %78, %79 : vector<8x32xf32>
    %81 = math.tanh %80 : vector<8x32xf32>
    %82 = arith.mulf %77, %81 : vector<8x32xf32>
    %c1_37 = arith.constant 1 : index
    %83 = arith.index_cast %c1_i32 : i32 to index
    %c0_38 = arith.constant 0 : index
    %c0_39 = arith.constant 0 : index
    %84 = vector.load %arg12[%c1_37, %83, %c0_38, %c0_39] : memref<2x8x8x32xf32, #tpu.memory_space<vmem>>, vector<1x1x8x32xf32>
    %85 = vector.shape_cast %84 : vector<1x1x8x32xf32> to vector<8x32xf32>
    %86 = vector.shape_cast %82 : vector<8x32xf32> to vector<1x1x8x32xf32>
    tpu.vector_store %arg12[%c1_37, %83, %c0_38, %c0_39], %86 {strides = array<i32>} : memref<2x8x8x32xf32, #tpu.memory_space<vmem>>, vector<1x1x8x32xf32>,
    %c2_i32 = arith.constant 2 : i32
    %87 = arith.index_cast %c2_i32 : i32 to index
    %c0_40 = arith.constant 0 : index
    %c0_41 = arith.constant 0 : index
    %88 = vector.load %arg13[%87, %c0_40, %c0_41] : memref<8x8x128xf32, #tpu.memory_space<vmem>>, vector<1x8x128xf32>
    %89 = vector.shape_cast %88 : vector<1x8x128xf32> to vector<8x128xf32>
    %90 = arith.truncf %82 : vector<8x32xf32> to vector<8x32xbf16>
    %cst_42 = arith.constant dense<0.000000e+00> : vector<8x128xf32>
    %91 = tpu.matmul %90, %24, %cst_42 {dimension_numbers = #tpu.dot_dimension_numbers<[1], [0], [0], [1], [0, 0, 1, 1], [], []>} : vector<8x32xbf16>, vector<32x128xbf16>, vector<8x128xf32> -> vector<8x128xf32>
    %92 = arith.addf %89, %91 : vector<8x128xf32>
    %93 = arith.negf %92 : vector<8x128xf32>
    %94 = math.exp %93 : vector<8x128xf32>
    %cst_43 = arith.constant 1.000000e+00 : f32
    %95 = vector.broadcast %cst_43 : f32 to vector<8x128xf32>
    %96 = arith.addf %95, %94 : vector<8x128xf32>
    %97 = arith.divf %95, %96 : vector<8x128xf32>
    %98 = math.tanh %92 : vector<8x128xf32>
    %99 = vector.extract_strided_slice %97 {offsets = [0, 0], sizes = [8, 32], strides = [1, 1]} : vector<8x128xf32> to vector<8x32xf32>
    %100 = vector.extract_strided_slice %97 {offsets = [0, 32], sizes = [8, 32], strides = [1, 1]} : vector<8x128xf32> to vector<8x32xf32>
    %101 = vector.extract_strided_slice %98 {offsets = [0, 64], sizes = [8, 32], strides = [1, 1]} : vector<8x128xf32> to vector<8x32xf32>
    %102 = vector.extract_strided_slice %97 {offsets = [0, 96], sizes = [8, 32], strides = [1, 1]} : vector<8x128xf32> to vector<8x32xf32>
    %103 = arith.mulf %100, %80 : vector<8x32xf32>
    %104 = arith.mulf %99, %101 : vector<8x32xf32>
    %105 = arith.addf %103, %104 : vector<8x32xf32>
    %106 = math.tanh %105 : vector<8x32xf32>
    %107 = arith.mulf %102, %106 : vector<8x32xf32>
    %c1_44 = arith.constant 1 : index
    %108 = arith.index_cast %c2_i32 : i32 to index
    %c0_45 = arith.constant 0 : index
    %c0_46 = arith.constant 0 : index
    %109 = vector.load %arg12[%c1_44, %108, %c0_45, %c0_46] : memref<2x8x8x32xf32, #tpu.memory_space<vmem>>, vector<1x1x8x32xf32>
    %110 = vector.shape_cast %109 : vector<1x1x8x32xf32> to vector<8x32xf32>
    %111 = vector.shape_cast %107 : vector<8x32xf32> to vector<1x1x8x32xf32>
    tpu.vector_store %arg12[%c1_44, %108, %c0_45, %c0_46], %111 {strides = array<i32>} : memref<2x8x8x32xf32, #tpu.memory_space<vmem>>, vector<1x1x8x32xf32>,
    %c3_i32 = arith.constant 3 : i32
    %112 = arith.index_cast %c3_i32 : i32 to index
    %c0_47 = arith.constant 0 : index
    %c0_48 = arith.constant 0 : index
    %113 = vector.load %arg13[%112, %c0_47, %c0_48] : memref<8x8x128xf32, #tpu.memory_space<vmem>>, vector<1x8x128xf32>
    %114 = vector.shape_cast %113 : vector<1x8x128xf32> to vector<8x128xf32>
    %115 = arith.truncf %107 : vector<8x32xf32> to vector<8x32xbf16>
    %cst_49 = arith.constant dense<0.000000e+00> : vector<8x128xf32>
    %116 = tpu.matmul %115, %24, %cst_49 {dimension_numbers = #tpu.dot_dimension_numbers<[1], [0], [0], [1], [0, 0, 1, 1], [], []>} : vector<8x32xbf16>, vector<32x128xbf16>, vector<8x128xf32> -> vector<8x128xf32>
    %117 = arith.addf %114, %116 : vector<8x128xf32>
    %118 = arith.negf %117 : vector<8x128xf32>
    %119 = math.exp %118 : vector<8x128xf32>
    %cst_50 = arith.constant 1.000000e+00 : f32
    %120 = vector.broadcast %cst_50 : f32 to vector<8x128xf32>
    %121 = arith.addf %120, %119 : vector<8x128xf32>
    %122 = arith.divf %120, %121 : vector<8x128xf32>
    %123 = math.tanh %117 : vector<8x128xf32>
    %124 = vector.extract_strided_slice %122 {offsets = [0, 0], sizes = [8, 32], strides = [1, 1]} : vector<8x128xf32> to vector<8x32xf32>
    %125 = vector.extract_strided_slice %122 {offsets = [0, 32], sizes = [8, 32], strides = [1, 1]} : vector<8x128xf32> to vector<8x32xf32>
    %126 = vector.extract_strided_slice %123 {offsets = [0, 64], sizes = [8, 32], strides = [1, 1]} : vector<8x128xf32> to vector<8x32xf32>
    %127 = vector.extract_strided_slice %122 {offsets = [0, 96], sizes = [8, 32], strides = [1, 1]} : vector<8x128xf32> to vector<8x32xf32>
    %128 = arith.mulf %125, %105 : vector<8x32xf32>
    %129 = arith.mulf %124, %126 : vector<8x32xf32>
    %130 = arith.addf %128, %129 : vector<8x32xf32>
    %131 = math.tanh %130 : vector<8x32xf32>
    %132 = arith.mulf %127, %131 : vector<8x32xf32>
    %c1_51 = arith.constant 1 : index
    %133 = arith.index_cast %c3_i32 : i32 to index
    %c0_52 = arith.constant 0 : index
    %c0_53 = arith.constant 0 : index
    %134 = vector.load %arg12[%c1_51, %133, %c0_52, %c0_53] : memref<2x8x8x32xf32, #tpu.memory_space<vmem>>, vector<1x1x8x32xf32>
    %135 = vector.shape_cast %134 : vector<1x1x8x32xf32> to vector<8x32xf32>
    %136 = vector.shape_cast %132 : vector<8x32xf32> to vector<1x1x8x32xf32>
    tpu.vector_store %arg12[%c1_51, %133, %c0_52, %c0_53], %136 {strides = array<i32>} : memref<2x8x8x32xf32, #tpu.memory_space<vmem>>, vector<1x1x8x32xf32>,
    %c4_i32 = arith.constant 4 : i32
    %137 = arith.index_cast %c4_i32 : i32 to index
    %c0_54 = arith.constant 0 : index
    %c0_55 = arith.constant 0 : index
    %138 = vector.load %arg13[%137, %c0_54, %c0_55] : memref<8x8x128xf32, #tpu.memory_space<vmem>>, vector<1x8x128xf32>
    %139 = vector.shape_cast %138 : vector<1x8x128xf32> to vector<8x128xf32>
    %140 = arith.truncf %132 : vector<8x32xf32> to vector<8x32xbf16>
    %cst_56 = arith.constant dense<0.000000e+00> : vector<8x128xf32>
    %141 = tpu.matmul %140, %24, %cst_56 {dimension_numbers = #tpu.dot_dimension_numbers<[1], [0], [0], [1], [0, 0, 1, 1], [], []>} : vector<8x32xbf16>, vector<32x128xbf16>, vector<8x128xf32> -> vector<8x128xf32>
    %142 = arith.addf %139, %141 : vector<8x128xf32>
    %143 = arith.negf %142 : vector<8x128xf32>
    %144 = math.exp %143 : vector<8x128xf32>
    %cst_57 = arith.constant 1.000000e+00 : f32
    %145 = vector.broadcast %cst_57 : f32 to vector<8x128xf32>
    %146 = arith.addf %145, %144 : vector<8x128xf32>
    %147 = arith.divf %145, %146 : vector<8x128xf32>
    %148 = math.tanh %142 : vector<8x128xf32>
    %149 = vector.extract_strided_slice %147 {offsets = [0, 0], sizes = [8, 32], strides = [1, 1]} : vector<8x128xf32> to vector<8x32xf32>
    %150 = vector.extract_strided_slice %147 {offsets = [0, 32], sizes = [8, 32], strides = [1, 1]} : vector<8x128xf32> to vector<8x32xf32>
    %151 = vector.extract_strided_slice %148 {offsets = [0, 64], sizes = [8, 32], strides = [1, 1]} : vector<8x128xf32> to vector<8x32xf32>
    %152 = vector.extract_strided_slice %147 {offsets = [0, 96], sizes = [8, 32], strides = [1, 1]} : vector<8x128xf32> to vector<8x32xf32>
    %153 = arith.mulf %150, %130 : vector<8x32xf32>
    %154 = arith.mulf %149, %151 : vector<8x32xf32>
    %155 = arith.addf %153, %154 : vector<8x32xf32>
    %156 = math.tanh %155 : vector<8x32xf32>
    %157 = arith.mulf %152, %156 : vector<8x32xf32>
    %c1_58 = arith.constant 1 : index
    %158 = arith.index_cast %c4_i32 : i32 to index
    %c0_59 = arith.constant 0 : index
    %c0_60 = arith.constant 0 : index
    %159 = vector.load %arg12[%c1_58, %158, %c0_59, %c0_60] : memref<2x8x8x32xf32, #tpu.memory_space<vmem>>, vector<1x1x8x32xf32>
    %160 = vector.shape_cast %159 : vector<1x1x8x32xf32> to vector<8x32xf32>
    %161 = vector.shape_cast %157 : vector<8x32xf32> to vector<1x1x8x32xf32>
    tpu.vector_store %arg12[%c1_58, %158, %c0_59, %c0_60], %161 {strides = array<i32>} : memref<2x8x8x32xf32, #tpu.memory_space<vmem>>, vector<1x1x8x32xf32>,
    %c5_i32 = arith.constant 5 : i32
    %162 = arith.index_cast %c5_i32 : i32 to index
    %c0_61 = arith.constant 0 : index
    %c0_62 = arith.constant 0 : index
    %163 = vector.load %arg13[%162, %c0_61, %c0_62] : memref<8x8x128xf32, #tpu.memory_space<vmem>>, vector<1x8x128xf32>
    %164 = vector.shape_cast %163 : vector<1x8x128xf32> to vector<8x128xf32>
    %165 = arith.truncf %157 : vector<8x32xf32> to vector<8x32xbf16>
    %cst_63 = arith.constant dense<0.000000e+00> : vector<8x128xf32>
    %166 = tpu.matmul %165, %24, %cst_63 {dimension_numbers = #tpu.dot_dimension_numbers<[1], [0], [0], [1], [0, 0, 1, 1], [], []>} : vector<8x32xbf16>, vector<32x128xbf16>, vector<8x128xf32> -> vector<8x128xf32>
    %167 = arith.addf %164, %166 : vector<8x128xf32>
    %168 = arith.negf %167 : vector<8x128xf32>
    %169 = math.exp %168 : vector<8x128xf32>
    %cst_64 = arith.constant 1.000000e+00 : f32
    %170 = vector.broadcast %cst_64 : f32 to vector<8x128xf32>
    %171 = arith.addf %170, %169 : vector<8x128xf32>
    %172 = arith.divf %170, %171 : vector<8x128xf32>
    %173 = math.tanh %167 : vector<8x128xf32>
    %174 = vector.extract_strided_slice %172 {offsets = [0, 0], sizes = [8, 32], strides = [1, 1]} : vector<8x128xf32> to vector<8x32xf32>
    %175 = vector.extract_strided_slice %172 {offsets = [0, 32], sizes = [8, 32], strides = [1, 1]} : vector<8x128xf32> to vector<8x32xf32>
    %176 = vector.extract_strided_slice %173 {offsets = [0, 64], sizes = [8, 32], strides = [1, 1]} : vector<8x128xf32> to vector<8x32xf32>
    %177 = vector.extract_strided_slice %172 {offsets = [0, 96], sizes = [8, 32], strides = [1, 1]} : vector<8x128xf32> to vector<8x32xf32>
    %178 = arith.mulf %175, %155 : vector<8x32xf32>
    %179 = arith.mulf %174, %176 : vector<8x32xf32>
    %180 = arith.addf %178, %179 : vector<8x32xf32>
    %181 = math.tanh %180 : vector<8x32xf32>
    %182 = arith.mulf %177, %181 : vector<8x32xf32>
    %c1_65 = arith.constant 1 : index
    %183 = arith.index_cast %c5_i32 : i32 to index
    %c0_66 = arith.constant 0 : index
    %c0_67 = arith.constant 0 : index
    %184 = vector.load %arg12[%c1_65, %183, %c0_66, %c0_67] : memref<2x8x8x32xf32, #tpu.memory_space<vmem>>, vector<1x1x8x32xf32>
    %185 = vector.shape_cast %184 : vector<1x1x8x32xf32> to vector<8x32xf32>
    %186 = vector.shape_cast %182 : vector<8x32xf32> to vector<1x1x8x32xf32>
    tpu.vector_store %arg12[%c1_65, %183, %c0_66, %c0_67], %186 {strides = array<i32>} : memref<2x8x8x32xf32, #tpu.memory_space<vmem>>, vector<1x1x8x32xf32>,
    %c6_i32 = arith.constant 6 : i32
    %187 = arith.index_cast %c6_i32 : i32 to index
    %c0_68 = arith.constant 0 : index
    %c0_69 = arith.constant 0 : index
    %188 = vector.load %arg13[%187, %c0_68, %c0_69] : memref<8x8x128xf32, #tpu.memory_space<vmem>>, vector<1x8x128xf32>
    %189 = vector.shape_cast %188 : vector<1x8x128xf32> to vector<8x128xf32>
    %190 = arith.truncf %182 : vector<8x32xf32> to vector<8x32xbf16>
    %cst_70 = arith.constant dense<0.000000e+00> : vector<8x128xf32>
    %191 = tpu.matmul %190, %24, %cst_70 {dimension_numbers = #tpu.dot_dimension_numbers<[1], [0], [0], [1], [0, 0, 1, 1], [], []>} : vector<8x32xbf16>, vector<32x128xbf16>, vector<8x128xf32> -> vector<8x128xf32>
    %192 = arith.addf %189, %191 : vector<8x128xf32>
    %193 = arith.negf %192 : vector<8x128xf32>
    %194 = math.exp %193 : vector<8x128xf32>
    %cst_71 = arith.constant 1.000000e+00 : f32
    %195 = vector.broadcast %cst_71 : f32 to vector<8x128xf32>
    %196 = arith.addf %195, %194 : vector<8x128xf32>
    %197 = arith.divf %195, %196 : vector<8x128xf32>
    %198 = math.tanh %192 : vector<8x128xf32>
    %199 = vector.extract_strided_slice %197 {offsets = [0, 0], sizes = [8, 32], strides = [1, 1]} : vector<8x128xf32> to vector<8x32xf32>
    %200 = vector.extract_strided_slice %197 {offsets = [0, 32], sizes = [8, 32], strides = [1, 1]} : vector<8x128xf32> to vector<8x32xf32>
    %201 = vector.extract_strided_slice %198 {offsets = [0, 64], sizes = [8, 32], strides = [1, 1]} : vector<8x128xf32> to vector<8x32xf32>
    %202 = vector.extract_strided_slice %197 {offsets = [0, 96], sizes = [8, 32], strides = [1, 1]} : vector<8x128xf32> to vector<8x32xf32>
    %203 = arith.mulf %200, %180 : vector<8x32xf32>
    %204 = arith.mulf %199, %201 : vector<8x32xf32>
    %205 = arith.addf %203, %204 : vector<8x32xf32>
    %206 = math.tanh %205 : vector<8x32xf32>
    %207 = arith.mulf %202, %206 : vector<8x32xf32>
    %c1_72 = arith.constant 1 : index
    %208 = arith.index_cast %c6_i32 : i32 to index
    %c0_73 = arith.constant 0 : index
    %c0_74 = arith.constant 0 : index
    %209 = vector.load %arg12[%c1_72, %208, %c0_73, %c0_74] : memref<2x8x8x32xf32, #tpu.memory_space<vmem>>, vector<1x1x8x32xf32>
    %210 = vector.shape_cast %209 : vector<1x1x8x32xf32> to vector<8x32xf32>
    %211 = vector.shape_cast %207 : vector<8x32xf32> to vector<1x1x8x32xf32>
    tpu.vector_store %arg12[%c1_72, %208, %c0_73, %c0_74], %211 {strides = array<i32>} : memref<2x8x8x32xf32, #tpu.memory_space<vmem>>, vector<1x1x8x32xf32>,
    %c7_i32 = arith.constant 7 : i32
    %212 = arith.index_cast %c7_i32 : i32 to index
    %c0_75 = arith.constant 0 : index
    %c0_76 = arith.constant 0 : index
    %213 = vector.load %arg13[%212, %c0_75, %c0_76] : memref<8x8x128xf32, #tpu.memory_space<vmem>>, vector<1x8x128xf32>
    %214 = vector.shape_cast %213 : vector<1x8x128xf32> to vector<8x128xf32>
    %215 = arith.truncf %207 : vector<8x32xf32> to vector<8x32xbf16>
    %cst_77 = arith.constant dense<0.000000e+00> : vector<8x128xf32>
    %216 = tpu.matmul %215, %24, %cst_77 {dimension_numbers = #tpu.dot_dimension_numbers<[1], [0], [0], [1], [0, 0, 1, 1], [], []>} : vector<8x32xbf16>, vector<32x128xbf16>, vector<8x128xf32> -> vector<8x128xf32>
    %217 = arith.addf %214, %216 : vector<8x128xf32>
    %218 = arith.negf %217 : vector<8x128xf32>
    %219 = math.exp %218 : vector<8x128xf32>
    %cst_78 = arith.constant 1.000000e+00 : f32
    %220 = vector.broadcast %cst_78 : f32 to vector<8x128xf32>
    %221 = arith.addf %220, %219 : vector<8x128xf32>
    %222 = arith.divf %220, %221 : vector<8x128xf32>
    %223 = math.tanh %217 : vector<8x128xf32>
    %224 = vector.extract_strided_slice %222 {offsets = [0, 0], sizes = [8, 32], strides = [1, 1]} : vector<8x128xf32> to vector<8x32xf32>
    %225 = vector.extract_strided_slice %222 {offsets = [0, 32], sizes = [8, 32], strides = [1, 1]} : vector<8x128xf32> to vector<8x32xf32>
    %226 = vector.extract_strided_slice %223 {offsets = [0, 64], sizes = [8, 32], strides = [1, 1]} : vector<8x128xf32> to vector<8x32xf32>
    %227 = vector.extract_strided_slice %222 {offsets = [0, 96], sizes = [8, 32], strides = [1, 1]} : vector<8x128xf32> to vector<8x32xf32>
    %228 = arith.mulf %225, %205 : vector<8x32xf32>
    %229 = arith.mulf %224, %226 : vector<8x32xf32>
    %230 = arith.addf %228, %229 : vector<8x32xf32>
    %231 = math.tanh %230 : vector<8x32xf32>
    %232 = arith.mulf %227, %231 : vector<8x32xf32>
    %c1_79 = arith.constant 1 : index
    %233 = arith.index_cast %c7_i32 : i32 to index
    %c0_80 = arith.constant 0 : index
    %c0_81 = arith.constant 0 : index
    %234 = vector.load %arg12[%c1_79, %233, %c0_80, %c0_81] : memref<2x8x8x32xf32, #tpu.memory_space<vmem>>, vector<1x1x8x32xf32>
    %235 = vector.shape_cast %234 : vector<1x1x8x32xf32> to vector<8x32xf32>
    %236 = vector.shape_cast %232 : vector<8x32xf32> to vector<1x1x8x32xf32>
    tpu.vector_store %arg12[%c1_79, %233, %c0_80, %c0_81], %236 {strides = array<i32>} : memref<2x8x8x32xf32, #tpu.memory_space<vmem>>, vector<1x1x8x32xf32>,
    %c8_i32 = arith.constant 8 : i32
    %c0_82 = arith.constant 0 : index
    %c0_83 = arith.constant 0 : index
    %237 = vector.load %arg6[%c0_82, %c0_83] : memref<32x128xbf16, #tpu.memory_space<vmem>>, vector<32x128xbf16>
    %c0_84 = arith.constant 0 : index
    %c0_85 = arith.constant 0 : index
    %238 = vector.load %arg7[%c0_84, %c0_85] : memref<32x128xbf16, #tpu.memory_space<vmem>>, vector<32x128xbf16>
    %c0_86 = arith.constant 0 : index
    %c0_87 = arith.constant 0 : index
    %239 = vector.load %arg8[%c0_86, %c0_87] : memref<1x128xf32, #tpu.memory_space<vmem>>, vector<1x128xf32>
    %c1_88 = arith.constant 1 : index
    %c0_89 = arith.constant 0 : index
    %c0_90 = arith.constant 0 : index
    %c0_91 = arith.constant 0 : index
    %240 = vector.load %arg12[%c1_88, %c0_89, %c0_90, %c0_91] : memref<2x8x8x32xf32, #tpu.memory_space<vmem>>, vector<1x8x8x32xf32>
    %241 = vector.shape_cast %240 : vector<1x8x8x32xf32> to vector<8x8x32xf32>
    %242 = vector.shape_cast %241 : vector<8x8x32xf32> to vector<64x32xf32>
    %243 = arith.truncf %242 : vector<64x32xf32> to vector<64x32xbf16>
    %cst_92 = arith.constant dense<0.000000e+00> : vector<64x128xf32>
    %244 = tpu.matmul %243, %237, %cst_92 {dimension_numbers = #tpu.dot_dimension_numbers<[1], [0], [0], [1], [0, 0, 1, 1], [], []>} : vector<64x32xbf16>, vector<32x128xbf16>, vector<64x128xf32> -> vector<64x128xf32>
    %245 = vector.broadcast %239 : vector<1x128xf32> to vector<64x128xf32>
    %246 = arith.addf %244, %245 : vector<64x128xf32>
    %247 = vector.shape_cast %246 : vector<64x128xf32> to vector<8x8x128xf32>
    %c0_93 = arith.constant 0 : index
    %c0_94 = arith.constant 0 : index
    %c0_95 = arith.constant 0 : index
    %248 = vector.load %arg13[%c0_93, %c0_94, %c0_95] : memref<8x8x128xf32, #tpu.memory_space<vmem>>, vector<8x8x128xf32>
    tpu.vector_store %arg13[%c0_93, %c0_94, %c0_95], %247 {strides = array<i32>} : memref<8x8x128xf32, #tpu.memory_space<vmem>>, vector<8x8x128xf32>,
    %cst_96 = arith.constant 0.000000e+00 : f32
    %249 = vector.broadcast %cst_96 : f32 to vector<8x32xf32>
    %cst_97 = arith.constant 0.000000e+00 : f32
    %250 = vector.broadcast %cst_97 : f32 to vector<8x32xf32>
    %c0_i32_98 = arith.constant 0 : i32
    %251 = arith.index_cast %c0_i32_98 : i32 to index
    %c0_99 = arith.constant 0 : index
    %c0_100 = arith.constant 0 : index
    %252 = vector.load %arg13[%251, %c0_99, %c0_100] : memref<8x8x128xf32, #tpu.memory_space<vmem>>, vector<1x8x128xf32>
    %253 = vector.shape_cast %252 : vector<1x8x128xf32> to vector<8x128xf32>
    %254 = arith.truncf %249 : vector<8x32xf32> to vector<8x32xbf16>
    %cst_101 = arith.constant dense<0.000000e+00> : vector<8x128xf32>
    %255 = tpu.matmul %254, %238, %cst_101 {dimension_numbers = #tpu.dot_dimension_numbers<[1], [0], [0], [1], [0, 0, 1, 1], [], []>} : vector<8x32xbf16>, vector<32x128xbf16>, vector<8x128xf32> -> vector<8x128xf32>
    %256 = arith.addf %253, %255 : vector<8x128xf32>
    %257 = arith.negf %256 : vector<8x128xf32>
    %258 = math.exp %257 : vector<8x128xf32>
    %cst_102 = arith.constant 1.000000e+00 : f32
    %259 = vector.broadcast %cst_102 : f32 to vector<8x128xf32>
    %260 = arith.addf %259, %258 : vector<8x128xf32>
    %261 = arith.divf %259, %260 : vector<8x128xf32>
    %262 = math.tanh %256 : vector<8x128xf32>
    %263 = vector.extract_strided_slice %261 {offsets = [0, 0], sizes = [8, 32], strides = [1, 1]} : vector<8x128xf32> to vector<8x32xf32>
    %264 = vector.extract_strided_slice %261 {offsets = [0, 32], sizes = [8, 32], strides = [1, 1]} : vector<8x128xf32> to vector<8x32xf32>
    %265 = vector.extract_strided_slice %262 {offsets = [0, 64], sizes = [8, 32], strides = [1, 1]} : vector<8x128xf32> to vector<8x32xf32>
    %266 = vector.extract_strided_slice %261 {offsets = [0, 96], sizes = [8, 32], strides = [1, 1]} : vector<8x128xf32> to vector<8x32xf32>
    %267 = arith.mulf %264, %250 : vector<8x32xf32>
    %268 = arith.mulf %263, %265 : vector<8x32xf32>
    %269 = arith.addf %267, %268 : vector<8x32xf32>
    %270 = math.tanh %269 : vector<8x32xf32>
    %271 = arith.mulf %266, %270 : vector<8x32xf32>
    %c1_i32_103 = arith.constant 1 : i32
    %272 = arith.index_cast %c1_i32_103 : i32 to index
    %c0_104 = arith.constant 0 : index
    %c0_105 = arith.constant 0 : index
    %273 = vector.load %arg13[%272, %c0_104, %c0_105] : memref<8x8x128xf32, #tpu.memory_space<vmem>>, vector<1x8x128xf32>
    %274 = vector.shape_cast %273 : vector<1x8x128xf32> to vector<8x128xf32>
    %275 = arith.truncf %271 : vector<8x32xf32> to vector<8x32xbf16>
    %cst_106 = arith.constant dense<0.000000e+00> : vector<8x128xf32>
    %276 = tpu.matmul %275, %238, %cst_106 {dimension_numbers = #tpu.dot_dimension_numbers<[1], [0], [0], [1], [0, 0, 1, 1], [], []>} : vector<8x32xbf16>, vector<32x128xbf16>, vector<8x128xf32> -> vector<8x128xf32>
    %277 = arith.addf %274, %276 : vector<8x128xf32>
    %278 = arith.negf %277 : vector<8x128xf32>
    %279 = math.exp %278 : vector<8x128xf32>
    %cst_107 = arith.constant 1.000000e+00 : f32
    %280 = vector.broadcast %cst_107 : f32 to vector<8x128xf32>
    %281 = arith.addf %280, %279 : vector<8x128xf32>
    %282 = arith.divf %280, %281 : vector<8x128xf32>
    %283 = math.tanh %277 : vector<8x128xf32>
    %284 = vector.extract_strided_slice %282 {offsets = [0, 0], sizes = [8, 32], strides = [1, 1]} : vector<8x128xf32> to vector<8x32xf32>
    %285 = vector.extract_strided_slice %282 {offsets = [0, 32], sizes = [8, 32], strides = [1, 1]} : vector<8x128xf32> to vector<8x32xf32>
    %286 = vector.extract_strided_slice %283 {offsets = [0, 64], sizes = [8, 32], strides = [1, 1]} : vector<8x128xf32> to vector<8x32xf32>
    %287 = vector.extract_strided_slice %282 {offsets = [0, 96], sizes = [8, 32], strides = [1, 1]} : vector<8x128xf32> to vector<8x32xf32>
    %288 = arith.mulf %285, %269 : vector<8x32xf32>
    %289 = arith.mulf %284, %286 : vector<8x32xf32>
    %290 = arith.addf %288, %289 : vector<8x32xf32>
    %291 = math.tanh %290 : vector<8x32xf32>
    %292 = arith.mulf %287, %291 : vector<8x32xf32>
    %c2_i32_108 = arith.constant 2 : i32
    %293 = arith.index_cast %c2_i32_108 : i32 to index
    %c0_109 = arith.constant 0 : index
    %c0_110 = arith.constant 0 : index
    %294 = vector.load %arg13[%293, %c0_109, %c0_110] : memref<8x8x128xf32, #tpu.memory_space<vmem>>, vector<1x8x128xf32>
    %295 = vector.shape_cast %294 : vector<1x8x128xf32> to vector<8x128xf32>
    %296 = arith.truncf %292 : vector<8x32xf32> to vector<8x32xbf16>
    %cst_111 = arith.constant dense<0.000000e+00> : vector<8x128xf32>
    %297 = tpu.matmul %296, %238, %cst_111 {dimension_numbers = #tpu.dot_dimension_numbers<[1], [0], [0], [1], [0, 0, 1, 1], [], []>} : vector<8x32xbf16>, vector<32x128xbf16>, vector<8x128xf32> -> vector<8x128xf32>
    %298 = arith.addf %295, %297 : vector<8x128xf32>
    %299 = arith.negf %298 : vector<8x128xf32>
    %300 = math.exp %299 : vector<8x128xf32>
    %cst_112 = arith.constant 1.000000e+00 : f32
    %301 = vector.broadcast %cst_112 : f32 to vector<8x128xf32>
    %302 = arith.addf %301, %300 : vector<8x128xf32>
    %303 = arith.divf %301, %302 : vector<8x128xf32>
    %304 = math.tanh %298 : vector<8x128xf32>
    %305 = vector.extract_strided_slice %303 {offsets = [0, 0], sizes = [8, 32], strides = [1, 1]} : vector<8x128xf32> to vector<8x32xf32>
    %306 = vector.extract_strided_slice %303 {offsets = [0, 32], sizes = [8, 32], strides = [1, 1]} : vector<8x128xf32> to vector<8x32xf32>
    %307 = vector.extract_strided_slice %304 {offsets = [0, 64], sizes = [8, 32], strides = [1, 1]} : vector<8x128xf32> to vector<8x32xf32>
    %308 = vector.extract_strided_slice %303 {offsets = [0, 96], sizes = [8, 32], strides = [1, 1]} : vector<8x128xf32> to vector<8x32xf32>
    %309 = arith.mulf %306, %290 : vector<8x32xf32>
    %310 = arith.mulf %305, %307 : vector<8x32xf32>
    %311 = arith.addf %309, %310 : vector<8x32xf32>
    %312 = math.tanh %311 : vector<8x32xf32>
    %313 = arith.mulf %308, %312 : vector<8x32xf32>
    %c3_i32_113 = arith.constant 3 : i32
    %314 = arith.index_cast %c3_i32_113 : i32 to index
    %c0_114 = arith.constant 0 : index
    %c0_115 = arith.constant 0 : index
    %315 = vector.load %arg13[%314, %c0_114, %c0_115] : memref<8x8x128xf32, #tpu.memory_space<vmem>>, vector<1x8x128xf32>
    %316 = vector.shape_cast %315 : vector<1x8x128xf32> to vector<8x128xf32>
    %317 = arith.truncf %313 : vector<8x32xf32> to vector<8x32xbf16>
    %cst_116 = arith.constant dense<0.000000e+00> : vector<8x128xf32>
    %318 = tpu.matmul %317, %238, %cst_116 {dimension_numbers = #tpu.dot_dimension_numbers<[1], [0], [0], [1], [0, 0, 1, 1], [], []>} : vector<8x32xbf16>, vector<32x128xbf16>, vector<8x128xf32> -> vector<8x128xf32>
    %319 = arith.addf %316, %318 : vector<8x128xf32>
    %320 = arith.negf %319 : vector<8x128xf32>
    %321 = math.exp %320 : vector<8x128xf32>
    %cst_117 = arith.constant 1.000000e+00 : f32
    %322 = vector.broadcast %cst_117 : f32 to vector<8x128xf32>
    %323 = arith.addf %322, %321 : vector<8x128xf32>
    %324 = arith.divf %322, %323 : vector<8x128xf32>
    %325 = math.tanh %319 : vector<8x128xf32>
    %326 = vector.extract_strided_slice %324 {offsets = [0, 0], sizes = [8, 32], strides = [1, 1]} : vector<8x128xf32> to vector<8x32xf32>
    %327 = vector.extract_strided_slice %324 {offsets = [0, 32], sizes = [8, 32], strides = [1, 1]} : vector<8x128xf32> to vector<8x32xf32>
    %328 = vector.extract_strided_slice %325 {offsets = [0, 64], sizes = [8, 32], strides = [1, 1]} : vector<8x128xf32> to vector<8x32xf32>
    %329 = vector.extract_strided_slice %324 {offsets = [0, 96], sizes = [8, 32], strides = [1, 1]} : vector<8x128xf32> to vector<8x32xf32>
    %330 = arith.mulf %327, %311 : vector<8x32xf32>
    %331 = arith.mulf %326, %328 : vector<8x32xf32>
    %332 = arith.addf %330, %331 : vector<8x32xf32>
    %333 = math.tanh %332 : vector<8x32xf32>
    %334 = arith.mulf %329, %333 : vector<8x32xf32>
    %c4_i32_118 = arith.constant 4 : i32
    %335 = arith.index_cast %c4_i32_118 : i32 to index
    %c0_119 = arith.constant 0 : index
    %c0_120 = arith.constant 0 : index
    %336 = vector.load %arg13[%335, %c0_119, %c0_120] : memref<8x8x128xf32, #tpu.memory_space<vmem>>, vector<1x8x128xf32>
    %337 = vector.shape_cast %336 : vector<1x8x128xf32> to vector<8x128xf32>
    %338 = arith.truncf %334 : vector<8x32xf32> to vector<8x32xbf16>
    %cst_121 = arith.constant dense<0.000000e+00> : vector<8x128xf32>
    %339 = tpu.matmul %338, %238, %cst_121 {dimension_numbers = #tpu.dot_dimension_numbers<[1], [0], [0], [1], [0, 0, 1, 1], [], []>} : vector<8x32xbf16>, vector<32x128xbf16>, vector<8x128xf32> -> vector<8x128xf32>
    %340 = arith.addf %337, %339 : vector<8x128xf32>
    %341 = arith.negf %340 : vector<8x128xf32>
    %342 = math.exp %341 : vector<8x128xf32>
    %cst_122 = arith.constant 1.000000e+00 : f32
    %343 = vector.broadcast %cst_122 : f32 to vector<8x128xf32>
    %344 = arith.addf %343, %342 : vector<8x128xf32>
    %345 = arith.divf %343, %344 : vector<8x128xf32>
    %346 = math.tanh %340 : vector<8x128xf32>
    %347 = vector.extract_strided_slice %345 {offsets = [0, 0], sizes = [8, 32], strides = [1, 1]} : vector<8x128xf32> to vector<8x32xf32>
    %348 = vector.extract_strided_slice %345 {offsets = [0, 32], sizes = [8, 32], strides = [1, 1]} : vector<8x128xf32> to vector<8x32xf32>
    %349 = vector.extract_strided_slice %346 {offsets = [0, 64], sizes = [8, 32], strides = [1, 1]} : vector<8x128xf32> to vector<8x32xf32>
    %350 = vector.extract_strided_slice %345 {offsets = [0, 96], sizes = [8, 32], strides = [1, 1]} : vector<8x128xf32> to vector<8x32xf32>
    %351 = arith.mulf %348, %332 : vector<8x32xf32>
    %352 = arith.mulf %347, %349 : vector<8x32xf32>
    %353 = arith.addf %351, %352 : vector<8x32xf32>
    %354 = math.tanh %353 : vector<8x32xf32>
    %355 = arith.mulf %350, %354 : vector<8x32xf32>
    %c5_i32_123 = arith.constant 5 : i32
    %356 = arith.index_cast %c5_i32_123 : i32 to index
    %c0_124 = arith.constant 0 : index
    %c0_125 = arith.constant 0 : index
    %357 = vector.load %arg13[%356, %c0_124, %c0_125] : memref<8x8x128xf32, #tpu.memory_space<vmem>>, vector<1x8x128xf32>
    %358 = vector.shape_cast %357 : vector<1x8x128xf32> to vector<8x128xf32>
    %359 = arith.truncf %355 : vector<8x32xf32> to vector<8x32xbf16>
    %cst_126 = arith.constant dense<0.000000e+00> : vector<8x128xf32>
    %360 = tpu.matmul %359, %238, %cst_126 {dimension_numbers = #tpu.dot_dimension_numbers<[1], [0], [0], [1], [0, 0, 1, 1], [], []>} : vector<8x32xbf16>, vector<32x128xbf16>, vector<8x128xf32> -> vector<8x128xf32>
    %361 = arith.addf %358, %360 : vector<8x128xf32>
    %362 = arith.negf %361 : vector<8x128xf32>
    %363 = math.exp %362 : vector<8x128xf32>
    %cst_127 = arith.constant 1.000000e+00 : f32
    %364 = vector.broadcast %cst_127 : f32 to vector<8x128xf32>
    %365 = arith.addf %364, %363 : vector<8x128xf32>
    %366 = arith.divf %364, %365 : vector<8x128xf32>
    %367 = math.tanh %361 : vector<8x128xf32>
    %368 = vector.extract_strided_slice %366 {offsets = [0, 0], sizes = [8, 32], strides = [1, 1]} : vector<8x128xf32> to vector<8x32xf32>
    %369 = vector.extract_strided_slice %366 {offsets = [0, 32], sizes = [8, 32], strides = [1, 1]} : vector<8x128xf32> to vector<8x32xf32>
    %370 = vector.extract_strided_slice %367 {offsets = [0, 64], sizes = [8, 32], strides = [1, 1]} : vector<8x128xf32> to vector<8x32xf32>
    %371 = vector.extract_strided_slice %366 {offsets = [0, 96], sizes = [8, 32], strides = [1, 1]} : vector<8x128xf32> to vector<8x32xf32>
    %372 = arith.mulf %369, %353 : vector<8x32xf32>
    %373 = arith.mulf %368, %370 : vector<8x32xf32>
    %374 = arith.addf %372, %373 : vector<8x32xf32>
    %375 = math.tanh %374 : vector<8x32xf32>
    %376 = arith.mulf %371, %375 : vector<8x32xf32>
    %c6_i32_128 = arith.constant 6 : i32
    %377 = arith.index_cast %c6_i32_128 : i32 to index
    %c0_129 = arith.constant 0 : index
    %c0_130 = arith.constant 0 : index
    %378 = vector.load %arg13[%377, %c0_129, %c0_130] : memref<8x8x128xf32, #tpu.memory_space<vmem>>, vector<1x8x128xf32>
    %379 = vector.shape_cast %378 : vector<1x8x128xf32> to vector<8x128xf32>
    %380 = arith.truncf %376 : vector<8x32xf32> to vector<8x32xbf16>
    %cst_131 = arith.constant dense<0.000000e+00> : vector<8x128xf32>
    %381 = tpu.matmul %380, %238, %cst_131 {dimension_numbers = #tpu.dot_dimension_numbers<[1], [0], [0], [1], [0, 0, 1, 1], [], []>} : vector<8x32xbf16>, vector<32x128xbf16>, vector<8x128xf32> -> vector<8x128xf32>
    %382 = arith.addf %379, %381 : vector<8x128xf32>
    %383 = arith.negf %382 : vector<8x128xf32>
    %384 = math.exp %383 : vector<8x128xf32>
    %cst_132 = arith.constant 1.000000e+00 : f32
    %385 = vector.broadcast %cst_132 : f32 to vector<8x128xf32>
    %386 = arith.addf %385, %384 : vector<8x128xf32>
    %387 = arith.divf %385, %386 : vector<8x128xf32>
    %388 = math.tanh %382 : vector<8x128xf32>
    %389 = vector.extract_strided_slice %387 {offsets = [0, 0], sizes = [8, 32], strides = [1, 1]} : vector<8x128xf32> to vector<8x32xf32>
    %390 = vector.extract_strided_slice %387 {offsets = [0, 32], sizes = [8, 32], strides = [1, 1]} : vector<8x128xf32> to vector<8x32xf32>
    %391 = vector.extract_strided_slice %388 {offsets = [0, 64], sizes = [8, 32], strides = [1, 1]} : vector<8x128xf32> to vector<8x32xf32>
    %392 = vector.extract_strided_slice %387 {offsets = [0, 96], sizes = [8, 32], strides = [1, 1]} : vector<8x128xf32> to vector<8x32xf32>
    %393 = arith.mulf %390, %374 : vector<8x32xf32>
    %394 = arith.mulf %389, %391 : vector<8x32xf32>
    %395 = arith.addf %393, %394 : vector<8x32xf32>
    %396 = math.tanh %395 : vector<8x32xf32>
    %397 = arith.mulf %392, %396 : vector<8x32xf32>
    %c7_i32_133 = arith.constant 7 : i32
    %398 = arith.index_cast %c7_i32_133 : i32 to index
    %c0_134 = arith.constant 0 : index
    %c0_135 = arith.constant 0 : index
    %399 = vector.load %arg13[%398, %c0_134, %c0_135] : memref<8x8x128xf32, #tpu.memory_space<vmem>>, vector<1x8x128xf32>
    %400 = vector.shape_cast %399 : vector<1x8x128xf32> to vector<8x128xf32>
    %401 = arith.truncf %397 : vector<8x32xf32> to vector<8x32xbf16>
    %cst_136 = arith.constant dense<0.000000e+00> : vector<8x128xf32>
    %402 = tpu.matmul %401, %238, %cst_136 {dimension_numbers = #tpu.dot_dimension_numbers<[1], [0], [0], [1], [0, 0, 1, 1], [], []>} : vector<8x32xbf16>, vector<32x128xbf16>, vector<8x128xf32> -> vector<8x128xf32>
    %403 = arith.addf %400, %402 : vector<8x128xf32>
    %404 = arith.negf %403 : vector<8x128xf32>
    %405 = math.exp %404 : vector<8x128xf32>
    %cst_137 = arith.constant 1.000000e+00 : f32
    %406 = vector.broadcast %cst_137 : f32 to vector<8x128xf32>
    %407 = arith.addf %406, %405 : vector<8x128xf32>
    %408 = arith.divf %406, %407 : vector<8x128xf32>
    %409 = math.tanh %403 : vector<8x128xf32>
    %410 = vector.extract_strided_slice %408 {offsets = [0, 0], sizes = [8, 32], strides = [1, 1]} : vector<8x128xf32> to vector<8x32xf32>
    %411 = vector.extract_strided_slice %408 {offsets = [0, 32], sizes = [8, 32], strides = [1, 1]} : vector<8x128xf32> to vector<8x32xf32>
    %412 = vector.extract_strided_slice %409 {offsets = [0, 64], sizes = [8, 32], strides = [1, 1]} : vector<8x128xf32> to vector<8x32xf32>
    %413 = vector.extract_strided_slice %408 {offsets = [0, 96], sizes = [8, 32], strides = [1, 1]} : vector<8x128xf32> to vector<8x32xf32>
    %414 = arith.mulf %411, %395 : vector<8x32xf32>
    %415 = arith.mulf %410, %412 : vector<8x32xf32>
    %416 = arith.addf %414, %415 : vector<8x32xf32>
    %417 = math.tanh %416 : vector<8x32xf32>
    %418 = arith.mulf %413, %417 : vector<8x32xf32>
    %c8_i32_138 = arith.constant 8 : i32
    %419 = arith.truncf %418 : vector<8x32xf32> to vector<8x32xbf16>
    %c0_139 = arith.constant 0 : index
    %c0_140 = arith.constant 0 : index
    %420 = vector.load %arg9[%c0_139, %c0_140] : memref<32x4xbf16, #tpu.memory_space<vmem>>, vector<32x4xbf16>
    %cst_141 = arith.constant dense<0.000000e+00> : vector<8x4xf32>
    %421 = tpu.matmul %419, %420, %cst_141 {dimension_numbers = #tpu.dot_dimension_numbers<[1], [0], [0], [1], [0, 0, 1, 1], [], []>} : vector<8x32xbf16>, vector<32x4xbf16>, vector<8x4xf32> -> vector<8x4xf32>
    %c0_142 = arith.constant 0 : index
    %c0_143 = arith.constant 0 : index
    %422 = vector.load %arg10[%c0_142, %c0_143] : memref<1x4xf32, #tpu.memory_space<vmem>>, vector<1x4xf32>
    %423 = vector.broadcast %422 : vector<1x4xf32> to vector<8x4xf32>
    %424 = arith.addf %421, %423 : vector<8x4xf32>
    %cst_144 = arith.constant 0.000000e+00 : f32
    %425 = vector.broadcast %cst_144 : f32 to vector<8x4xf32>
    %426 = arith.maximumf %424, %425 : vector<8x4xf32>
    %c0_145 = arith.constant 0 : index
    %c0_146 = arith.constant 0 : index
    %427 = vector.load %arg11[%c0_145, %c0_146] : memref<8x4xf32, #tpu.memory_space<vmem>>, vector<8x4xf32>
    tpu.vector_store %arg11[%c0_145, %c0_146], %426 {strides = array<i32>} : memref<8x4xf32, #tpu.memory_space<vmem>>, vector<8x4xf32>,
    return
  }
}

</mosaic_0001>

<llo_original>
// kernel: conv_lstm_forward.1
$region0: #{conv_lstm_forward.1}
  #allocation0 [shape = 'u32[]', space=smem, size = 0x4, offset = 0x4, fixed_abs, tag = 'smem constant byte address 0x4 - core index']
  #allocation1 [shape = 'u32[144,128]{1,0:T(1,128)}', space=vmem, size = 0x12000, scoped, tag = 'internal scratch']
  #allocation2 [shape = 'f32[2,8,8,32]{3,2,1,0:T(8,128)}', space=vmem, size = 0x10000, scoped, tag = 'scratch operand']
  #allocation3 [shape = 'f32[8,8,128]{2,1,0:T(8,128)}', space=vmem, size = 0x8000, scoped, tag = 'scratch operand']
  %s0 = inlined_call_operand.vmem [shape: f32[8,8,4], index: 0, kind: input, shape index: {}]
  %s1 = inlined_call_operand.vmem [shape: bf16[4,96], index: 1, kind: input, shape index: {}]
  %s2 = inlined_call_operand.vmem [shape: f32[1,32], index: 2, kind: input, shape index: {}]
  %s3 = inlined_call_operand.vmem [shape: bf16[32,128], index: 3, kind: input, shape index: {}]
  %s4 = inlined_call_operand.vmem [shape: bf16[32,128], index: 4, kind: input, shape index: {}]
  %s5 = inlined_call_operand.vmem [shape: f32[1,128], index: 5, kind: input, shape index: {}]
  %s6 = inlined_call_operand.vmem [shape: bf16[32,128], index: 6, kind: input, shape index: {}]
  %s7 = inlined_call_operand.vmem [shape: bf16[32,128], index: 7, kind: input, shape index: {}]
  %s8 = inlined_call_operand.vmem [shape: f32[1,128], index: 8, kind: input, shape index: {}]
  %s9 = inlined_call_operand.vmem [shape: bf16[32,4], index: 9, kind: input, shape index: {}]
  %s10 = inlined_call_operand.vmem [shape: f32[1,4], index: 10, kind: input, shape index: {}]
  %s11 = inlined_call_operand.vmem [shape: f32[8,4], index: 11, kind: output, shape index: {}]
  %s12 = sld [smem:[#allocation0]]
  $region54: #{conv_lstm_forward.1} parent=0
    _
  %s14 = ssub.s32 1, %s12
  %s15 = scalar_select 0, %s14, %s12
  // Predicated region
  $region2: #{conv_lstm_forward.1} parent=0 // pred_check
    _
  $region3: #{conv_lstm_forward.1} parent=0 // pred_check_branch
    %17 = sbr.rel (0) target = $region5
  $region4: #{conv_lstm_forward.1} parent=0 // pred_region
    _
  $region5: #{conv_lstm_forward.1} parent=0 // pred_fallthru
    _
  // Predicated region
  $region6: #{conv_lstm_forward.1} parent=0 // pred_check
    _
  $region7: #{conv_lstm_forward.1} parent=0 // pred_check_branch
    %19 = sbr.rel (0) target = $region9
  $region8: #{conv_lstm_forward.1} parent=0 // pred_region
    _
  $region9: #{conv_lstm_forward.1} parent=0 // pred_fallthru
    _
  // Predicated region
  $region10: #{conv_lstm_forward.1} parent=0 // pred_check
    _
  $region11: #{conv_lstm_forward.1} parent=0 // pred_check_branch
    %21 = sbr.rel (0) target = $region13
  $region12: #{conv_lstm_forward.1} parent=0 // pred_region
    _
  $region13: #{conv_lstm_forward.1} parent=0 // pred_fallthru
    _
  // Predicated region
  $region14: #{conv_lstm_forward.1} parent=0 // pred_check
    _
  $region15: #{conv_lstm_forward.1} parent=0 // pred_check_branch
    %23 = sbr.rel (0) target = $region17
  $region16: #{conv_lstm_forward.1} parent=0 // pred_region
    _
  $region17: #{conv_lstm_forward.1} parent=0 // pred_fallthru
    _
  // Predicated region
  $region18: #{conv_lstm_forward.1} parent=0 // pred_check
    _
  $region19: #{conv_lstm_forward.1} parent=0 // pred_check_branch
    %25 = sbr.rel (0) target = $region21
  $region20: #{conv_lstm_forward.1} parent=0 // pred_region
    _
  $region21: #{conv_lstm_forward.1} parent=0 // pred_fallthru
    _
  // Predicated region
  $region22: #{conv_lstm_forward.1} parent=0 // pred_check
    _
  $region23: #{conv_lstm_forward.1} parent=0 // pred_check_branch
    %27 = sbr.rel (0) target = $region25
  $region24: #{conv_lstm_forward.1} parent=0 // pred_region
    _
  $region25: #{conv_lstm_forward.1} parent=0 // pred_fallthru
    _
  // Predicated region
  $region26: #{conv_lstm_forward.1} parent=0 // pred_check
    _
  $region27: #{conv_lstm_forward.1} parent=0 // pred_check_branch
    %29 = sbr.rel (0) target = $region29
  $region28: #{conv_lstm_forward.1} parent=0 // pred_region
    _
  $region29: #{conv_lstm_forward.1} parent=0 // pred_fallthru
    _
  // Predicated region
  $region30: #{conv_lstm_forward.1} parent=0 // pred_check
    _
  $region31: #{conv_lstm_forward.1} parent=0 // pred_check_branch
    %31 = sbr.rel (0) target = $region33
  $region32: #{conv_lstm_forward.1} parent=0 // pred_region
    _
  $region33: #{conv_lstm_forward.1} parent=0 // pred_fallthru
    _
  // Predicated region
  $region34: #{conv_lstm_forward.1} parent=0 // pred_check
    _
  $region35: #{conv_lstm_forward.1} parent=0 // pred_check_branch
    %33 = sbr.rel (0) target = $region37
  $region36: #{conv_lstm_forward.1} parent=0 // pred_region
    _
  $region37: #{conv_lstm_forward.1} parent=0 // pred_fallthru
    _
  // Predicated region
  $region38: #{conv_lstm_forward.1} parent=0 // pred_check
    _
  $region39: #{conv_lstm_forward.1} parent=0 // pred_check_branch
    %35 = sbr.rel (0) target = $region41
  $region40: #{conv_lstm_forward.1} parent=0 // pred_region
    _
  $region41: #{conv_lstm_forward.1} parent=0 // pred_fallthru
    _
  // Predicated region
  $region42: #{conv_lstm_forward.1} parent=0 // pred_check
    _
  $region43: #{conv_lstm_forward.1} parent=0 // pred_check_branch
    %37 = sbr.rel (0) target = $region45
  $region44: #{conv_lstm_forward.1} parent=0 // pred_region
    _
  $region45: #{conv_lstm_forward.1} parent=0 // pred_fallthru
    _
  %v39 = vld [vmem:[%s0] sm:$0xff]
  %v40 = vld [vmem:[%s0 + $0x8] sm:$0xff]
  %v41 = vld [vmem:[%s0 + $0x10] sm:$0xff]
  %v42 = vld [vmem:[%s0 + $0x18] sm:$0xff]
  %v43 = vld [vmem:[%s0 + $0x20] sm:$0xff]
  %v44 = vld [vmem:[%s0 + $0x28] sm:$0xff]
  %v45 = vld [vmem:[%s0 + $0x30] sm:$0xff]
  %v46 = vld [vmem:[%s0 + $0x38] sm:$0xff]
  %v47 = vpack.c.bf16 %v40, %v39
  %v48 = vpack.c.bf16 %v42, %v41
  %v49 = vpack.c.bf16 %v44, %v43
  %v50 = vpack.c.bf16 %v46, %v45
  %v51 = vld [vmem:[%s1] sm:$0x3]
  %vm52 = vcmask 31744
  %v54 = vsel %vm52, %v47, 0
  %v57 = vsel %vm52, %v48, 0
  %v60 = vsel %vm52, %v49, 0
  %v63 = vsel %vm52, %v50, 0
  %vm65 = vcmask 1041408
  %v67 = vsel %vm65, %v51, 0
  %69 = vmatprep.subr.bf16.mxu0 0
  %70 = vmatpush1.bf16.msra.mxu0 0
  %71 = vmatprep.subr.bf16.mxu0 0
  %72 = vmatpush1.bf16.msra.mxu0 0
  %73 = vmatprep.subr.bf16.mxu0 0
  %74 = vmatpush1.bf16.msra.mxu0 0
  %75 = vmatprep.subr.bf16.mxu0 0
  %76 = vmatpush1.bf16.msra.mxu0 0
  %77 = vmatprep.subr.bf16.mxu0 0
  %78 = vmatpush1.bf16.msra.mxu0 0
  %79 = vmatprep.subr.bf16.mxu0 0
  %80 = vmatpush1.bf16.msra.mxu0 0
  %81 = vmatprep.subr.bf16.mxu0 0
  %82 = vmatpush1.bf16.msra.mxu0 0
  %83 = vmatprep.subr.bf16.mxu0 0
  %84 = vmatpush1.bf16.msra.mxu0 %v67
  %85 = vmatprep.subr.bf16.mxu0 0
  %86 = vmatpush2.bf16.msra.mxu0 0
  %87 = vmatprep.subr.bf16.mxu0 0
  %88 = vmatpush2.bf16.msra.mxu0 0
  %89 = vmatprep.subr.bf16.mxu0 0
  %90 = vmatpush2.bf16.msra.mxu0 0
  %91 = vmatprep.subr.bf16.mxu0 0
  %92 = vmatpush2.bf16.msra.mxu0 0
  %93 = vmatprep.subr.bf16.mxu0 0
  %94 = vmatpush2.bf16.msra.mxu0 0
  %95 = vmatprep.subr.bf16.mxu0 0
  %96 = vmatpush2.bf16.msra.mxu0 0
  %97 = vmatprep.subr.bf16.mxu0 0
  %98 = vmatpush2.bf16.msra.mxu0 0
  %99 = vmatprep.subr.bf16.mxu0 0
  %100 = vmatpush2.bf16.msra.mxu0 0
  %101 = vmatprep.mubr.bf16.mxu0 0
  %102 = vmatmul.mubr.bf16.gmra.mxu0 %v54
  %v103 = vpop.f32.mrf.mxu0
  %v104 = vadd.f32 0.0, %v103
  %v105 = vpop.f32.mrf.mxu0
  %v106 = vpop.f32.mrf.mxu0
  %v107 = vadd.f32 0.0, %v106
  %v108 = vpop.f32.mrf.mxu0
  %109 = vmatprep.mubr.bf16.mxu0 0
  %110 = vmatmul.mubr.bf16.gmra.mxu0 %v57
  %v111 = vpop.f32.mrf.mxu0
  %v112 = vadd.f32 0.0, %v111
  %v113 = vpop.f32.mrf.mxu0
  %v114 = vpop.f32.mrf.mxu0
  %v115 = vadd.f32 0.0, %v114
  %v116 = vpop.f32.mrf.mxu0
  %117 = vmatprep.mubr.bf16.mxu0 0
  %118 = vmatmul.mubr.bf16.gmra.mxu0 %v60
  %v119 = vpop.f32.mrf.mxu0
  %v120 = vadd.f32 0.0, %v119
  %v121 = vpop.f32.mrf.mxu0
  %v122 = vpop.f32.mrf.mxu0
  %v123 = vadd.f32 0.0, %v122
  %v124 = vpop.f32.mrf.mxu0
  %125 = vmatprep.mubr.bf16.mxu0 0
  %126 = vmatmul.mubr.bf16.gmra.mxu0 %v63
  %v127 = vpop.f32.mrf.mxu0
  %v128 = vadd.f32 0.0, %v127
  %v129 = vpop.f32.mrf.mxu0
  %v130 = vpop.f32.mrf.mxu0
  %v131 = vadd.f32 0.0, %v130
  %v132 = vpop.f32.mrf.mxu0
  %133 = vdwg.mxu0
  %142 = vrot.lane.b32.xlu0 %v104, 96
  %v143 = vpop.permute.xlu0 %142
  %144 = vrot.lane.b32.xlu0 %v107, 96
  %v145 = vpop.permute.xlu0 %144
  %146 = vrot.lane.b32.xlu0 %v112, 96
  %v147 = vpop.permute.xlu0 %146
  %148 = vrot.lane.b32.xlu0 %v115, 96
  %v149 = vpop.permute.xlu0 %148
  %150 = vrot.lane.b32.xlu0 %v120, 96
  %v151 = vpop.permute.xlu0 %150
  %152 = vrot.lane.b32.xlu0 %v123, 96
  %v153 = vpop.permute.xlu0 %152
  %154 = vrot.lane.b32.xlu0 %v128, 96
  %v155 = vpop.permute.xlu0 %154
  %156 = vrot.lane.b32.xlu0 %v131, 96
  %v157 = vpop.permute.xlu0 %156
  %v166 = vadd.f32 %v143, 0.0
  %v167 = vadd.f32 %v104, %v145
  %v168 = vadd.f32 %v107, %v147
  %v169 = vadd.f32 %v112, %v149
  %v170 = vadd.f32 %v115, %v151
  %v171 = vadd.f32 %v120, %v153
  %v172 = vadd.f32 %v123, %v155
  %v173 = vadd.f32 %v128, %v157
  %175 = vrot.lane.b32.xlu0 %v107, 64
  %v176 = vpop.permute.xlu0 %175
  %177 = vrot.lane.b32.xlu0 %v112, 64
  %v178 = vpop.permute.xlu0 %177
  %179 = vrot.lane.b32.xlu0 %v115, 64
  %v180 = vpop.permute.xlu0 %179
  %181 = vrot.lane.b32.xlu0 %v120, 64
  %v182 = vpop.permute.xlu0 %181
  %183 = vrot.lane.b32.xlu0 %v123, 64
  %v184 = vpop.permute.xlu0 %183
  %185 = vrot.lane.b32.xlu0 %v128, 64
  %v186 = vpop.permute.xlu0 %185
  %187 = vrot.lane.b32.xlu0 %v131, 64
  %v188 = vpop.permute.xlu0 %187
  %189 = vrot.lane.b32.xlu0 0.0, 64
  %v190 = vpop.permute.xlu0 %189
  %v199 = vadd.f32 %v166, %v176
  %v200 = vadd.f32 %v167, %v178
  %v201 = vadd.f32 %v168, %v180
  %v202 = vadd.f32 %v169, %v182
  %v203 = vadd.f32 %v170, %v184
  %v204 = vadd.f32 %v171, %v186
  %v205 = vadd.f32 %v172, %v188
  %v206 = vadd.f32 %v173, %v190
  %v207 = vld [vmem:[%s2] sm:$0x1]
  %v209 = vlaneseq
  %v210 = vshrl.u32 %v209, 7
  %v211 = vsub.s32 0, %v210
  %v212 = vrot.slane %v207, %v211
  %v214 = vadd.f32 %v199, %v212
  %v215 = vadd.f32 %v200, %v212
  %v216 = vadd.f32 %v201, %v212
  %v217 = vadd.f32 %v202, %v212
  %v218 = vadd.f32 %v203, %v212
  %v219 = vadd.f32 %v204, %v212
  %v220 = vadd.f32 %v205, %v212
  %v221 = vadd.f32 %v206, %v212
  %vm222 = vcmask 261120
  %223 = vst.msk [vmem:[#allocation2] sm:$0xff] %vm222, %v214
  %224 = vst.msk [vmem:[#allocation2 + $0x8] sm:$0xff] %vm222, %v215
  %225 = vst.msk [vmem:[#allocation2 + $0x10] sm:$0xff] %vm222, %v216
  %226 = vst.msk [vmem:[#allocation2 + $0x18] sm:$0xff] %vm222, %v217
  %227 = vst.msk [vmem:[#allocation2 + $0x20] sm:$0xff] %vm222, %v218
  %228 = vst.msk [vmem:[#allocation2 + $0x28] sm:$0xff] %vm222, %v219
  %229 = vst.msk [vmem:[#allocation2 + $0x30] sm:$0xff] %vm222, %v220
  %230 = vst.msk [vmem:[#allocation2 + $0x38] sm:$0xff] %vm222, %v221
  %v231 = vld [vmem:[%s3] sm:$0xf]
  %v232 = vld [vmem:[%s3 + $0x4] sm:$0xf]
  %v233 = vld [vmem:[%s3 + $0x8] sm:$0xf]
  %v234 = vld [vmem:[%s3 + $0xc] sm:$0xf]
  %v235 = vld [vmem:[%s4] sm:$0xf]
  %v236 = vld [vmem:[%s4 + $0x4] sm:$0xf]
  %v237 = vld [vmem:[%s4 + $0x8] sm:$0xf]
  %v238 = vld [vmem:[%s4 + $0xc] sm:$0xf]
  %v239 = vld [vmem:[%s5] sm:$0x1]
  %v240 = vld [vmem:[#allocation2] sm:$0xff]
  %v241 = vld [vmem:[#allocation2 + $0x8] sm:$0xff]
  %v242 = vld [vmem:[#allocation2 + $0x10] sm:$0xff]
  %v243 = vld [vmem:[#allocation2 + $0x18] sm:$0xff]
  %v244 = vld [vmem:[#allocation2 + $0x20] sm:$0xff]
  %v245 = vld [vmem:[#allocation2 + $0x28] sm:$0xff]
  %v246 = vld [vmem:[#allocation2 + $0x30] sm:$0xff]
  %v247 = vld [vmem:[#allocation2 + $0x38] sm:$0xff]
  %v248 = vpack.c.bf16 %v241, %v240
  %v249 = vpack.c.bf16 %v243, %v242
  %v250 = vpack.c.bf16 %v245, %v244
  %v251 = vpack.c.bf16 %v247, %v246
  %v253 = vlaneseq
  %v254 = vshrl.u32 %v253, 7
  %v255 = vsub.s32 0, %v254
  %v256 = vrot.slane %v239, %v255
  %v262 = vunpack.c.l.b16 %v231
  %v263 = vunpack.c.l.b16 %v232
  %v264 = vunpack.c.l.b16 %v233
  %v265 = vunpack.c.l.b16 %v234
  %v266 = vpack.c.b16 %v263, %v262
  %v267 = vpack.c.b16 %v265, %v264
  %v271 = vsel %vm222, %v248, 0
  %v274 = vsel %vm222, %v249, 0
  %v277 = vsel %vm222, %v250, 0
  %v280 = vsel %vm222, %v251, 0
  %282 = vmatprep.subr.bf16.mxu0 0
  %283 = vmatpush1.bf16.msra.mxu0 0
  %284 = vmatprep.subr.bf16.mxu0 0
  %285 = vmatpush1.bf16.msra.mxu0 0
  %286 = vmatprep.subr.bf16.mxu0 0
  %287 = vmatpush1.bf16.msra.mxu0 0
  %288 = vmatprep.subr.bf16.mxu0 0
  %289 = vmatpush1.bf16.msra.mxu0 0
  %290 = vmatprep.subr.bf16.mxu0 0
  %291 = vmatpush1.bf16.msra.mxu0 0
  %292 = vmatprep.subr.bf16.mxu0 0
  %293 = vmatpush1.bf16.msra.mxu0 0
  %294 = vmatprep.subr.bf16.mxu0 0
  %295 = vmatpush1.bf16.msra.mxu0 %v267
  %296 = vmatprep.subr.bf16.mxu0 0
  %297 = vmatpush1.bf16.msra.mxu0 %v266
  %298 = vmatprep.subr.bf16.mxu0 0
  %299 = vmatpush2.bf16.msra.mxu0 0
  %300 = vmatprep.subr.bf16.mxu0 0
  %301 = vmatpush2.bf16.msra.mxu0 0
  %302 = vmatprep.subr.bf16.mxu0 0
  %303 = vmatpush2.bf16.msra.mxu0 0
  %304 = vmatprep.subr.bf16.mxu0 0
  %305 = vmatpush2.bf16.msra.mxu0 0
  %306 = vmatprep.subr.bf16.mxu0 0
  %307 = vmatpush2.bf16.msra.mxu0 0
  %308 = vmatprep.subr.bf16.mxu0 0
  %309 = vmatpush2.bf16.msra.mxu0 0
  %310 = vmatprep.subr.bf16.mxu0 0
  %311 = vmatpush2.bf16.msra.mxu0 0
  %312 = vmatprep.subr.bf16.mxu0 0
  %313 = vmatpush2.bf16.msra.mxu0 0
  %314 = vmatprep.mubr.bf16.mxu0 0
  %315 = vmatmul.mubr.bf16.gmra.mxu0 %v271
  %v316 = vpop.f32.mrf.mxu0
  %v317 = vadd.f32 %v256, %v316
  %v318 = vpop.f32.mrf.mxu0
  %v319 = vpop.f32.mrf.mxu0
  %v320 = vadd.f32 %v256, %v319
  %v321 = vpop.f32.mrf.mxu0
  %322 = vmatprep.mubr.bf16.mxu0 0
  %323 = vmatmul.mubr.bf16.gmra.mxu0 %v274
  %v324 = vpop.f32.mrf.mxu0
  %v325 = vadd.f32 %v256, %v324
  %v326 = vpop.f32.mrf.mxu0
  %v327 = vpop.f32.mrf.mxu0
  %v328 = vadd.f32 %v256, %v327
  %v329 = vpop.f32.mrf.mxu0
  %330 = vmatprep.mubr.bf16.mxu0 0
  %331 = vmatmul.mubr.bf16.gmra.mxu0 %v277
  %v332 = vpop.f32.mrf.mxu0
  %v333 = vadd.f32 %v256, %v332
  %v334 = vpop.f32.mrf.mxu0
  %v335 = vpop.f32.mrf.mxu0
  %v336 = vadd.f32 %v256, %v335
  %v337 = vpop.f32.mrf.mxu0
  %338 = vmatprep.mubr.bf16.mxu0 0
  %339 = vmatmul.mubr.bf16.gmra.mxu0 %v280
  %v340 = vpop.f32.mrf.mxu0
  %v341 = vadd.f32 %v256, %v340
  %v342 = vpop.f32.mrf.mxu0
  %v343 = vpop.f32.mrf.mxu0
  %v344 = vadd.f32 %v256, %v343
  %v345 = vpop.f32.mrf.mxu0
  %346 = vdwg.mxu0
  %347 = vst [vmem:[#allocation3] sm:$0xff] %v317
  %348 = vst [vmem:[#allocation3 + $0x8] sm:$0xff] %v320
  %349 = vst [vmem:[#allocation3 + $0x10] sm:$0xff] %v325
  %350 = vst [vmem:[#allocation3 + $0x18] sm:$0xff] %v328
  %351 = vst [vmem:[#allocation3 + $0x20] sm:$0xff] %v333
  %352 = vst [vmem:[#allocation3 + $0x28] sm:$0xff] %v336
  %353 = vst [vmem:[#allocation3 + $0x30] sm:$0xff] %v341
  %354 = vst [vmem:[#allocation3 + $0x38] sm:$0xff] %v344
  %v355 = vld [vmem:[#allocation3] sm:$0xff]
  %v360 = vunpack.c.l.b16 %v235
  %v361 = vunpack.c.l.b16 %v236
  %v362 = vunpack.c.l.b16 %v237
  %v363 = vunpack.c.l.b16 %v238
  %v364 = vpack.c.b16 %v361, %v360
  %v365 = vpack.c.b16 %v363, %v362
  %v369 = vsel %vm222, 0, 0
  %371 = vmatprep.subr.bf16.mxu0 0
  %372 = vmatpush1.bf16.msra.mxu0 0
  %373 = vmatprep.subr.bf16.mxu0 0
  %374 = vmatpush1.bf16.msra.mxu0 0
  %375 = vmatprep.subr.bf16.mxu0 0
  %376 = vmatpush1.bf16.msra.mxu0 0
  %377 = vmatprep.subr.bf16.mxu0 0
  %378 = vmatpush1.bf16.msra.mxu0 0
  %379 = vmatprep.subr.bf16.mxu0 0
  %380 = vmatpush1.bf16.msra.mxu0 0
  %381 = vmatprep.subr.bf16.mxu0 0
  %382 = vmatpush1.bf16.msra.mxu0 0
  %383 = vmatprep.subr.bf16.mxu0 0
  %384 = vmatpush1.bf16.msra.mxu0 %v365
  %385 = vmatprep.subr.bf16.mxu0 0
  %386 = vmatpush1.bf16.msra.mxu0 %v364
  %387 = vmatprep.subr.bf16.mxu0 0
  %388 = vmatpush2.bf16.msra.mxu0 0
  %389 = vmatprep.subr.bf16.mxu0 0
  %390 = vmatpush2.bf16.msra.mxu0 0
  %391 = vmatprep.subr.bf16.mxu0 0
  %392 = vmatpush2.bf16.msra.mxu0 0
  %393 = vmatprep.subr.bf16.mxu0 0
  %394 = vmatpush2.bf16.msra.mxu0 0
  %395 = vmatprep.subr.bf16.mxu0 0
  %396 = vmatpush2.bf16.msra.mxu0 0
  %397 = vmatprep.subr.bf16.mxu0 0
  %398 = vmatpush2.bf16.msra.mxu0 0
  %399 = vmatprep.subr.bf16.mxu0 0
  %400 = vmatpush2.bf16.msra.mxu0 0
  %401 = vmatprep.subr.bf16.mxu0 0
  %402 = vmatpush2.bf16.msra.mxu0 0
  %403 = vmatprep.mubr.bf16.mxu0 0
  %404 = vmatmul.mubr.bf16.gmra.mxu0 %v369
  %v405 = vpop.f32.mrf.mxu0
  %v406 = vadd.f32 0.0, %v405
  %v407 = vpop.f32.mrf.mxu0
  %v408 = vpop.f32.mrf.mxu0
  %v409 = vpop.f32.mrf.mxu0
  %410 = vdwg.mxu0
  %v411 = vadd.f32 %v355, %v406
  %v412 = vxor.u32 %v411, 2147483648
  %v413 = vmul.f32 %v412, 1.442695
  %v414 = vpow.pop %v413
  %v415 = vadd.f32 %v414, 1.0
  %v416 = vrcp.pop %v415
  %v417 = vmul.f32 1.0, %v416
  %v418 = vtanh.pop %v411
  %v419 = vmul.f32 %v417, 0.0
  %421 = vrot.lane.b32.xlu0 %v418, 64
  %v422 = vpop.permute.xlu0 %421
  %v424 = vmul.f32 %v417, %v422
  %426 = vrot.lane.b32.xlu0 %v424, 32
  %v427 = vpop.permute.xlu0 %426
  %v429 = vadd.f32 %v419, %v427
  %v430 = vtanh.pop %v429
  %432 = vrot.lane.b32.xlu0 %v430, 64
  %v433 = vpop.permute.xlu0 %432
  %v435 = vmul.f32 %v417, %v433
  %437 = vrot.lane.b32.xlu0 %v435, 32
  %v438 = vpop.permute.xlu0 %437
  %s440 = scalar_lea.vmem [#allocation2], 64
  %441 = vst.msk [vmem:[%s440] sm:$0xff] %vm222, %v438
  %s442 = scalar_lea.vmem [#allocation3], 8
  %v443 = vld [vmem:[%s442] sm:$0xff]
  %v444 = vpack.c.bf16 %v435, %v435
  %446 = vrot.lane.b32.xlu0 %v444, 32
  %v447 = vpop.permute.xlu0 %446
  %v449 = vsel %vm222, %v447, 0
  %451 = vmatprep.subr.bf16.mxu0 0
  %452 = vmatpush1.bf16.msra.mxu0 0
  %453 = vmatprep.subr.bf16.mxu0 0
  %454 = vmatpush1.bf16.msra.mxu0 0
  %455 = vmatprep.subr.bf16.mxu0 0
  %456 = vmatpush1.bf16.msra.mxu0 0
  %457 = vmatprep.subr.bf16.mxu0 0
  %458 = vmatpush1.bf16.msra.mxu0 0
  %459 = vmatprep.subr.bf16.mxu0 0
  %460 = vmatpush1.bf16.msra.mxu0 0
  %461 = vmatprep.subr.bf16.mxu0 0
  %462 = vmatpush1.bf16.msra.mxu0 0
  %463 = vmatprep.subr.bf16.mxu0 0
  %464 = vmatpush1.bf16.msra.mxu0 %v365
  %465 = vmatprep.subr.bf16.mxu0 0
  %466 = vmatpush1.bf16.msra.mxu0 %v364
  %467 = vmatprep.subr.bf16.mxu0 0
  %468 = vmatpush2.bf16.msra.mxu0 0
  %469 = vmatprep.subr.bf16.mxu0 0
  %470 = vmatpush2.bf16.msra.mxu0 0
  %471 = vmatprep.subr.bf16.mxu0 0
  %472 = vmatpush2.bf16.msra.mxu0 0
  %473 = vmatprep.subr.bf16.mxu0 0
  %474 = vmatpush2.bf16.msra.mxu0 0
  %475 = vmatprep.subr.bf16.mxu0 0
  %476 = vmatpush2.bf16.msra.mxu0 0
  %477 = vmatprep.subr.bf16.mxu0 0
  %478 = vmatpush2.bf16.msra.mxu0 0
  %479 = vmatprep.subr.bf16.mxu0 0
  %480 = vmatpush2.bf16.msra.mxu0 0
  %481 = vmatprep.subr.bf16.mxu0 0
  %482 = vmatpush2.bf16.msra.mxu0 0
  %483 = vmatprep.mubr.bf16.mxu0 0
  %484 = vmatmul.mubr.bf16.gmra.mxu0 %v449
  %v485 = vpop.f32.mrf.mxu0
  %v486 = vadd.f32 0.0, %v485
  %v487 = vpop.f32.mrf.mxu0
  %v488 = vpop.f32.mrf.mxu0
  %v489 = vpop.f32.mrf.mxu0
  %490 = vdwg.mxu0
  %v491 = vadd.f32 %v443, %v486
  %v492 = vxor.u32 %v491, 2147483648
  %v493 = vmul.f32 %v492, 1.442695
  %v494 = vpow.pop %v493
  %v495 = vadd.f32 %v494, 1.0
  %v496 = vrcp.pop %v495
  %v497 = vmul.f32 1.0, %v496
  %v498 = vtanh.pop %v491
  %v499 = vmul.f32 %v497, %v429
  %501 = vrot.lane.b32.xlu0 %v498, 64
  %v502 = vpop.permute.xlu0 %501
  %v504 = vmul.f32 %v497, %v502
  %506 = vrot.lane.b32.xlu0 %v504, 32
  %v507 = vpop.permute.xlu0 %506
  %v509 = vadd.f32 %v499, %v507
  %v510 = vtanh.pop %v509
  %512 = vrot.lane.b32.xlu0 %v510, 64
  %v513 = vpop.permute.xlu0 %512
  %v515 = vmul.f32 %v497, %v513
  %517 = vrot.lane.b32.xlu0 %v515, 32
  %v518 = vpop.permute.xlu0 %517
  %s520 = scalar_lea.vmem [#allocation2], 72
  %521 = vst.msk [vmem:[%s520] sm:$0xff] %vm222, %v518
  %s522 = scalar_lea.vmem [#allocation3], 16
  %v523 = vld [vmem:[%s522] sm:$0xff]
  %v524 = vpack.c.bf16 %v515, %v515
  %526 = vrot.lane.b32.xlu0 %v524, 32
  %v527 = vpop.permute.xlu0 %526
  %v529 = vsel %vm222, %v527, 0
  %531 = vmatprep.subr.bf16.mxu0 0
  %532 = vmatpush1.bf16.msra.mxu0 0
  %533 = vmatprep.subr.bf16.mxu0 0
  %534 = vmatpush1.bf16.msra.mxu0 0
  %535 = vmatprep.subr.bf16.mxu0 0
  %536 = vmatpush1.bf16.msra.mxu0 0
  %537 = vmatprep.subr.bf16.mxu0 0
  %538 = vmatpush1.bf16.msra.mxu0 0
  %539 = vmatprep.subr.bf16.mxu0 0
  %540 = vmatpush1.bf16.msra.mxu0 0
  %541 = vmatprep.subr.bf16.mxu0 0
  %542 = vmatpush1.bf16.msra.mxu0 0
  %543 = vmatprep.subr.bf16.mxu0 0
  %544 = vmatpush1.bf16.msra.mxu0 %v365
  %545 = vmatprep.subr.bf16.mxu0 0
  %546 = vmatpush1.bf16.msra.mxu0 %v364
  %547 = vmatprep.subr.bf16.mxu0 0
  %548 = vmatpush2.bf16.msra.mxu0 0
  %549 = vmatprep.subr.bf16.mxu0 0
  %550 = vmatpush2.bf16.msra.mxu0 0
  %551 = vmatprep.subr.bf16.mxu0 0
  %552 = vmatpush2.bf16.msra.mxu0 0
  %553 = vmatprep.subr.bf16.mxu0 0
  %554 = vmatpush2.bf16.msra.mxu0 0
  %555 = vmatprep.subr.bf16.mxu0 0
  %556 = vmatpush2.bf16.msra.mxu0 0
  %557 = vmatprep.subr.bf16.mxu0 0
  %558 = vmatpush2.bf16.msra.mxu0 0
  %559 = vmatprep.subr.bf16.mxu0 0
  %560 = vmatpush2.bf16.msra.mxu0 0
  %561 = vmatprep.subr.bf16.mxu0 0
  %562 = vmatpush2.bf16.msra.mxu0 0
  %563 = vmatprep.mubr.bf16.mxu0 0
  %564 = vmatmul.mubr.bf16.gmra.mxu0 %v529
  %v565 = vpop.f32.mrf.mxu0
  %v566 = vadd.f32 0.0, %v565
  %v567 = vpop.f32.mrf.mxu0
  %v568 = vpop.f32.mrf.mxu0
  %v569 = vpop.f32.mrf.mxu0
  %570 = vdwg.mxu0
  %v571 = vadd.f32 %v523, %v566
  %v572 = vxor.u32 %v571, 2147483648
  %v573 = vmul.f32 %v572, 1.442695
  %v574 = vpow.pop %v573
  %v575 = vadd.f32 %v574, 1.0
  %v576 = vrcp.pop %v575
  %v577 = vmul.f32 1.0, %v576
  %v578 = vtanh.pop %v571
  %v579 = vmul.f32 %v577, %v509
  %581 = vrot.lane.b32.xlu0 %v578, 64
  %v582 = vpop.permute.xlu0 %581
  %v584 = vmul.f32 %v577, %v582
  %586 = vrot.lane.b32.xlu0 %v584, 32
  %v587 = vpop.permute.xlu0 %586
  %v589 = vadd.f32 %v579, %v587
  %v590 = vtanh.pop %v589
  %592 = vrot.lane.b32.xlu0 %v590, 64
  %v593 = vpop.permute.xlu0 %592
  %v595 = vmul.f32 %v577, %v593
  %597 = vrot.lane.b32.xlu0 %v595, 32
  %v598 = vpop.permute.xlu0 %597
  %s600 = scalar_lea.vmem [#allocation2], 80
  %601 = vst.msk [vmem:[%s600] sm:$0xff] %vm222, %v598
  %s602 = scalar_lea.vmem [#allocation3], 24
  %v603 = vld [vmem:[%s602] sm:$0xff]
  %v604 = vpack.c.bf16 %v595, %v595
  %606 = vrot.lane.b32.xlu0 %v604, 32
  %v607 = vpop.permute.xlu0 %606
  %v609 = vsel %vm222, %v607, 0
  %611 = vmatprep.subr.bf16.mxu0 0
  %612 = vmatpush1.bf16.msra.mxu0 0
  %613 = vmatprep.subr.bf16.mxu0 0
  %614 = vmatpush1.bf16.msra.mxu0 0
  %615 = vmatprep.subr.bf16.mxu0 0
  %616 = vmatpush1.bf16.msra.mxu0 0
  %617 = vmatprep.subr.bf16.mxu0 0
  %618 = vmatpush1.bf16.msra.mxu0 0
  %619 = vmatprep.subr.bf16.mxu0 0
  %620 = vmatpush1.bf16.msra.mxu0 0
  %621 = vmatprep.subr.bf16.mxu0 0
  %622 = vmatpush1.bf16.msra.mxu0 0
  %623 = vmatprep.subr.bf16.mxu0 0
  %624 = vmatpush1.bf16.msra.mxu0 %v365
  %625 = vmatprep.subr.bf16.mxu0 0
  %626 = vmatpush1.bf16.msra.mxu0 %v364
  %627 = vmatprep.subr.bf16.mxu0 0
  %628 = vmatpush2.bf16.msra.mxu0 0
  %629 = vmatprep.subr.bf16.mxu0 0
  %630 = vmatpush2.bf16.msra.mxu0 0
  %631 = vmatprep.subr.bf16.mxu0 0
  %632 = vmatpush2.bf16.msra.mxu0 0
  %633 = vmatprep.subr.bf16.mxu0 0
  %634 = vmatpush2.bf16.msra.mxu0 0
  %635 = vmatprep.subr.bf16.mxu0 0
  %636 = vmatpush2.bf16.msra.mxu0 0
  %637 = vmatprep.subr.bf16.mxu0 0
  %638 = vmatpush2.bf16.msra.mxu0 0
  %639 = vmatprep.subr.bf16.mxu0 0
  %640 = vmatpush2.bf16.msra.mxu0 0
  %641 = vmatprep.subr.bf16.mxu0 0
  %642 = vmatpush2.bf16.msra.mxu0 0
  %643 = vmatprep.mubr.bf16.mxu0 0
  %644 = vmatmul.mubr.bf16.gmra.mxu0 %v609
  %v645 = vpop.f32.mrf.mxu0
  %v646 = vadd.f32 0.0, %v645
  %v647 = vpop.f32.mrf.mxu0
  %v648 = vpop.f32.mrf.mxu0
  %v649 = vpop.f32.mrf.mxu0
  %650 = vdwg.mxu0
  %v651 = vadd.f32 %v603, %v646
  %v652 = vxor.u32 %v651, 2147483648
  %v653 = vmul.f32 %v652, 1.442695
  %v654 = vpow.pop %v653
  %v655 = vadd.f32 %v654, 1.0
  %v656 = vrcp.pop %v655
  %v657 = vmul.f32 1.0, %v656
  %v658 = vtanh.pop %v651
  %v659 = vmul.f32 %v657, %v589
  %661 = vrot.lane.b32.xlu0 %v658, 64
  %v662 = vpop.permute.xlu0 %661
  %v664 = vmul.f32 %v657, %v662
  %666 = vrot.lane.b32.xlu0 %v664, 32
  %v667 = vpop.permute.xlu0 %666
  %v669 = vadd.f32 %v659, %v667
  %v670 = vtanh.pop %v669
  %672 = vrot.lane.b32.xlu0 %v670, 64
  %v673 = vpop.permute.xlu0 %672
  %v675 = vmul.f32 %v657, %v673
  %677 = vrot.lane.b32.xlu0 %v675, 32
  %v678 = vpop.permute.xlu0 %677
  %s680 = scalar_lea.vmem [#allocation2], 88
  %681 = vst.msk [vmem:[%s680] sm:$0xff] %vm222, %v678
  %s682 = scalar_lea.vmem [#allocation3], 32
  %v683 = vld [vmem:[%s682] sm:$0xff]
  %v684 = vpack.c.bf16 %v675, %v675
  %686 = vrot.lane.b32.xlu0 %v684, 32
  %v687 = vpop.permute.xlu0 %686
  %v689 = vsel %vm222, %v687, 0
  %691 = vmatprep.subr.bf16.mxu0 0
  %692 = vmatpush1.bf16.msra.mxu0 0
  %693 = vmatprep.subr.bf16.mxu0 0
  %694 = vmatpush1.bf16.msra.mxu0 0
  %695 = vmatprep.subr.bf16.mxu0 0
  %696 = vmatpush1.bf16.msra.mxu0 0
  %697 = vmatprep.subr.bf16.mxu0 0
  %698 = vmatpush1.bf16.msra.mxu0 0
  %699 = vmatprep.subr.bf16.mxu0 0
  %700 = vmatpush1.bf16.msra.mxu0 0
  %701 = vmatprep.subr.bf16.mxu0 0
  %702 = vmatpush1.bf16.msra.mxu0 0
  %703 = vmatprep.subr.bf16.mxu0 0
  %704 = vmatpush1.bf16.msra.mxu0 %v365
  %705 = vmatprep.subr.bf16.mxu0 0
  %706 = vmatpush1.bf16.msra.mxu0 %v364
  %707 = vmatprep.subr.bf16.mxu0 0
  %708 = vmatpush2.bf16.msra.mxu0 0
  %709 = vmatprep.subr.bf16.mxu0 0
  %710 = vmatpush2.bf16.msra.mxu0 0
  %711 = vmatprep.subr.bf16.mxu0 0
  %712 = vmatpush2.bf16.msra.mxu0 0
  %713 = vmatprep.subr.bf16.mxu0 0
  %714 = vmatpush2.bf16.msra.mxu0 0
  %715 = vmatprep.subr.bf16.mxu0 0
  %716 = vmatpush2.bf16.msra.mxu0 0
  %717 = vmatprep.subr.bf16.mxu0 0
  %718 = vmatpush2.bf16.msra.mxu0 0
  %719 = vmatprep.subr.bf16.mxu0 0
  %720 = vmatpush2.bf16.msra.mxu0 0
  %721 = vmatprep.subr.bf16.mxu0 0
  %722 = vmatpush2.bf16.msra.mxu0 0
  %723 = vmatprep.mubr.bf16.mxu0 0
  %724 = vmatmul.mubr.bf16.gmra.mxu0 %v689
  %v725 = vpop.f32.mrf.mxu0
  %v726 = vadd.f32 0.0, %v725
  %v727 = vpop.f32.mrf.mxu0
  %v728 = vpop.f32.mrf.mxu0
  %v729 = vpop.f32.mrf.mxu0
  %730 = vdwg.mxu0
  %v731 = vadd.f32 %v683, %v726
  %v732 = vxor.u32 %v731, 2147483648
  %v733 = vmul.f32 %v732, 1.442695
  %v734 = vpow.pop %v733
  %v735 = vadd.f32 %v734, 1.0
  %v736 = vrcp.pop %v735
  %v737 = vmul.f32 1.0, %v736
  %v738 = vtanh.pop %v731
  %v739 = vmul.f32 %v737, %v669
  %741 = vrot.lane.b32.xlu0 %v738, 64
  %v742 = vpop.permute.xlu0 %741
  %v744 = vmul.f32 %v737, %v742
  %746 = vrot.lane.b32.xlu0 %v744, 32
  %v747 = vpop.permute.xlu0 %746
  %v749 = vadd.f32 %v739, %v747
  %v750 = vtanh.pop %v749
  %752 = vrot.lane.b32.xlu0 %v750, 64
  %v753 = vpop.permute.xlu0 %752
  %v755 = vmul.f32 %v737, %v753
  %757 = vrot.lane.b32.xlu0 %v755, 32
  %v758 = vpop.permute.xlu0 %757
  %s760 = scalar_lea.vmem [#allocation2], 96
  %761 = vst.msk [vmem:[%s760] sm:$0xff] %vm222, %v758
  %s762 = scalar_lea.vmem [#allocation3], 40
  %v763 = vld [vmem:[%s762] sm:$0xff]
  %v764 = vpack.c.bf16 %v755, %v755
  %766 = vrot.lane.b32.xlu0 %v764, 32
  %v767 = vpop.permute.xlu0 %766
  %v769 = vsel %vm222, %v767, 0
  %771 = vmatprep.subr.bf16.mxu0 0
  %772 = vmatpush1.bf16.msra.mxu0 0
  %773 = vmatprep.subr.bf16.mxu0 0
  %774 = vmatpush1.bf16.msra.mxu0 0
  %775 = vmatprep.subr.bf16.mxu0 0
  %776 = vmatpush1.bf16.msra.mxu0 0
  %777 = vmatprep.subr.bf16.mxu0 0
  %778 = vmatpush1.bf16.msra.mxu0 0
  %779 = vmatprep.subr.bf16.mxu0 0
  %780 = vmatpush1.bf16.msra.mxu0 0
  %781 = vmatprep.subr.bf16.mxu0 0
  %782 = vmatpush1.bf16.msra.mxu0 0
  %783 = vmatprep.subr.bf16.mxu0 0
  %784 = vmatpush1.bf16.msra.mxu0 %v365
  %785 = vmatprep.subr.bf16.mxu0 0
  %786 = vmatpush1.bf16.msra.mxu0 %v364
  %787 = vmatprep.subr.bf16.mxu0 0
  %788 = vmatpush2.bf16.msra.mxu0 0
  %789 = vmatprep.subr.bf16.mxu0 0
  %790 = vmatpush2.bf16.msra.mxu0 0
  %791 = vmatprep.subr.bf16.mxu0 0
  %792 = vmatpush2.bf16.msra.mxu0 0
  %793 = vmatprep.subr.bf16.mxu0 0
  %794 = vmatpush2.bf16.msra.mxu0 0
  %795 = vmatprep.subr.bf16.mxu0 0
  %796 = vmatpush2.bf16.msra.mxu0 0
  %797 = vmatprep.subr.bf16.mxu0 0
  %798 = vmatpush2.bf16.msra.mxu0 0
  %799 = vmatprep.subr.bf16.mxu0 0
  %800 = vmatpush2.bf16.msra.mxu0 0
  %801 = vmatprep.subr.bf16.mxu0 0
  %802 = vmatpush2.bf16.msra.mxu0 0
  %803 = vmatprep.mubr.bf16.mxu0 0
  %804 = vmatmul.mubr.bf16.gmra.mxu0 %v769
  %v805 = vpop.f32.mrf.mxu0
  %v806 = vadd.f32 0.0, %v805
  %v807 = vpop.f32.mrf.mxu0
  %v808 = vpop.f32.mrf.mxu0
  %v809 = vpop.f32.mrf.mxu0
  %810 = vdwg.mxu0
  %v811 = vadd.f32 %v763, %v806
  %v812 = vxor.u32 %v811, 2147483648
  %v813 = vmul.f32 %v812, 1.442695
  %v814 = vpow.pop %v813
  %v815 = vadd.f32 %v814, 1.0
  %v816 = vrcp.pop %v815
  %v817 = vmul.f32 1.0, %v816
  %v818 = vtanh.pop %v811
  %v819 = vmul.f32 %v817, %v749
  %821 = vrot.lane.b32.xlu0 %v818, 64
  %v822 = vpop.permute.xlu0 %821
  %v824 = vmul.f32 %v817, %v822
  %826 = vrot.lane.b32.xlu0 %v824, 32
  %v827 = vpop.permute.xlu0 %826
  %v829 = vadd.f32 %v819, %v827
  %v830 = vtanh.pop %v829
  %832 = vrot.lane.b32.xlu0 %v830, 64
  %v833 = vpop.permute.xlu0 %832
  %v835 = vmul.f32 %v817, %v833
  %837 = vrot.lane.b32.xlu0 %v835, 32
  %v838 = vpop.permute.xlu0 %837
  %s840 = scalar_lea.vmem [#allocation2], 104
  %841 = vst.msk [vmem:[%s840] sm:$0xff] %vm222, %v838
  %s842 = scalar_lea.vmem [#allocation3], 48
  %v843 = vld [vmem:[%s842] sm:$0xff]
  %v844 = vpack.c.bf16 %v835, %v835
  %846 = vrot.lane.b32.xlu0 %v844, 32
  %v847 = vpop.permute.xlu0 %846
  %v849 = vsel %vm222, %v847, 0
  %851 = vmatprep.subr.bf16.mxu0 0
  %852 = vmatpush1.bf16.msra.mxu0 0
  %853 = vmatprep.subr.bf16.mxu0 0
  %854 = vmatpush1.bf16.msra.mxu0 0
  %855 = vmatprep.subr.bf16.mxu0 0
  %856 = vmatpush1.bf16.msra.mxu0 0
  %857 = vmatprep.subr.bf16.mxu0 0
  %858 = vmatpush1.bf16.msra.mxu0 0
  %859 = vmatprep.subr.bf16.mxu0 0
  %860 = vmatpush1.bf16.msra.mxu0 0
  %861 = vmatprep.subr.bf16.mxu0 0
  %862 = vmatpush1.bf16.msra.mxu0 0
  %863 = vmatprep.subr.bf16.mxu0 0
  %864 = vmatpush1.bf16.msra.mxu0 %v365
  %865 = vmatprep.subr.bf16.mxu0 0
  %866 = vmatpush1.bf16.msra.mxu0 %v364
  %867 = vmatprep.subr.bf16.mxu0 0
  %868 = vmatpush2.bf16.msra.mxu0 0
  %869 = vmatprep.subr.bf16.mxu0 0
  %870 = vmatpush2.bf16.msra.mxu0 0
  %871 = vmatprep.subr.bf16.mxu0 0
  %872 = vmatpush2.bf16.msra.mxu0 0
  %873 = vmatprep.subr.bf16.mxu0 0
  %874 = vmatpush2.bf16.msra.mxu0 0
  %875 = vmatprep.subr.bf16.mxu0 0
  %876 = vmatpush2.bf16.msra.mxu0 0
  %877 = vmatprep.subr.bf16.mxu0 0
  %878 = vmatpush2.bf16.msra.mxu0 0
  %879 = vmatprep.subr.bf16.mxu0 0
  %880 = vmatpush2.bf16.msra.mxu0 0
  %881 = vmatprep.subr.bf16.mxu0 0
  %882 = vmatpush2.bf16.msra.mxu0 0
  %883 = vmatprep.mubr.bf16.mxu0 0
  %884 = vmatmul.mubr.bf16.gmra.mxu0 %v849
  %v885 = vpop.f32.mrf.mxu0
  %v886 = vadd.f32 0.0, %v885
  %v887 = vpop.f32.mrf.mxu0
  %v888 = vpop.f32.mrf.mxu0
  %v889 = vpop.f32.mrf.mxu0
  %890 = vdwg.mxu0
  %v891 = vadd.f32 %v843, %v886
  %v892 = vxor.u32 %v891, 2147483648
  %v893 = vmul.f32 %v892, 1.442695
  %v894 = vpow.pop %v893
  %v895 = vadd.f32 %v894, 1.0
  %v896 = vrcp.pop %v895
  %v897 = vmul.f32 1.0, %v896
  %v898 = vtanh.pop %v891
  %v899 = vmul.f32 %v897, %v829
  %901 = vrot.lane.b32.xlu0 %v898, 64
  %v902 = vpop.permute.xlu0 %901
  %v904 = vmul.f32 %v897, %v902
  %906 = vrot.lane.b32.xlu0 %v904, 32
  %v907 = vpop.permute.xlu0 %906
  %v909 = vadd.f32 %v899, %v907
  %v910 = vtanh.pop %v909
  %912 = vrot.lane.b32.xlu0 %v910, 64
  %v913 = vpop.permute.xlu0 %912
  %v915 = vmul.f32 %v897, %v913
  %917 = vrot.lane.b32.xlu0 %v915, 32
  %v918 = vpop.permute.xlu0 %917
  %s920 = scalar_lea.vmem [#allocation2], 112
  %921 = vst.msk [vmem:[%s920] sm:$0xff] %vm222, %v918
  %s922 = scalar_lea.vmem [#allocation3], 56
  %v923 = vld [vmem:[%s922] sm:$0xff]
  %v924 = vpack.c.bf16 %v915, %v915
  %926 = vrot.lane.b32.xlu0 %v924, 32
  %v927 = vpop.permute.xlu0 %926
  %v929 = vsel %vm222, %v927, 0
  %931 = vmatprep.subr.bf16.mxu0 0
  %932 = vmatpush1.bf16.msra.mxu0 0
  %933 = vmatprep.subr.bf16.mxu0 0
  %934 = vmatpush1.bf16.msra.mxu0 0
  %935 = vmatprep.subr.bf16.mxu0 0
  %936 = vmatpush1.bf16.msra.mxu0 0
  %937 = vmatprep.subr.bf16.mxu0 0
  %938 = vmatpush1.bf16.msra.mxu0 0
  %939 = vmatprep.subr.bf16.mxu0 0
  %940 = vmatpush1.bf16.msra.mxu0 0
  %941 = vmatprep.subr.bf16.mxu0 0
  %942 = vmatpush1.bf16.msra.mxu0 0
  %943 = vmatprep.subr.bf16.mxu0 0
  %944 = vmatpush1.bf16.msra.mxu0 %v365
  %945 = vmatprep.subr.bf16.mxu0 0
  %946 = vmatpush1.bf16.msra.mxu0 %v364
  %947 = vmatprep.subr.bf16.mxu0 0
  %948 = vmatpush2.bf16.msra.mxu0 0
  %949 = vmatprep.subr.bf16.mxu0 0
  %950 = vmatpush2.bf16.msra.mxu0 0
  %951 = vmatprep.subr.bf16.mxu0 0
  %952 = vmatpush2.bf16.msra.mxu0 0
  %953 = vmatprep.subr.bf16.mxu0 0
  %954 = vmatpush2.bf16.msra.mxu0 0
  %955 = vmatprep.subr.bf16.mxu0 0
  %956 = vmatpush2.bf16.msra.mxu0 0
  %957 = vmatprep.subr.bf16.mxu0 0
  %958 = vmatpush2.bf16.msra.mxu0 0
  %959 = vmatprep.subr.bf16.mxu0 0
  %960 = vmatpush2.bf16.msra.mxu0 0
  %961 = vmatprep.subr.bf16.mxu0 0
  %962 = vmatpush2.bf16.msra.mxu0 0
  %963 = vmatprep.mubr.bf16.mxu0 0
  %964 = vmatmul.mubr.bf16.gmra.mxu0 %v929
  %v965 = vpop.f32.mrf.mxu0
  %v966 = vadd.f32 0.0, %v965
  %v967 = vpop.f32.mrf.mxu0
  %v968 = vpop.f32.mrf.mxu0
  %v969 = vpop.f32.mrf.mxu0
  %970 = vdwg.mxu0
  %v971 = vadd.f32 %v923, %v966
  %v972 = vxor.u32 %v971, 2147483648
  %v973 = vmul.f32 %v972, 1.442695
  %v974 = vpow.pop %v973
  %v975 = vadd.f32 %v974, 1.0
  %v976 = vrcp.pop %v975
  %v977 = vmul.f32 1.0, %v976
  %v978 = vtanh.pop %v971
  %v979 = vmul.f32 %v977, %v909
  %981 = vrot.lane.b32.xlu0 %v978, 64
  %v982 = vpop.permute.xlu0 %981
  %v984 = vmul.f32 %v977, %v982
  %986 = vrot.lane.b32.xlu0 %v984, 32
  %v987 = vpop.permute.xlu0 %986
  %v989 = vadd.f32 %v979, %v987
  %v990 = vtanh.pop %v989
  %992 = vrot.lane.b32.xlu0 %v990, 64
  %v993 = vpop.permute.xlu0 %992
  %v995 = vmul.f32 %v977, %v993
  %997 = vrot.lane.b32.xlu0 %v995, 32
  %v998 = vpop.permute.xlu0 %997
  %s1000 = scalar_lea.vmem [#allocation2], 120
  %1001 = vst.msk [vmem:[%s1000] sm:$0xff] %vm222, %v998
  %v1002 = vld [vmem:[%s6] sm:$0xf]
  %v1003 = vld [vmem:[%s6 + $0x4] sm:$0xf]
  %v1004 = vld [vmem:[%s6 + $0x8] sm:$0xf]
  %v1005 = vld [vmem:[%s6 + $0xc] sm:$0xf]
  %v1006 = vld [vmem:[%s7] sm:$0xf]
  %v1007 = vld [vmem:[%s7 + $0x4] sm:$0xf]
  %v1008 = vld [vmem:[%s7 + $0x8] sm:$0xf]
  %v1009 = vld [vmem:[%s7 + $0xc] sm:$0xf]
  %v1010 = vld [vmem:[%s8] sm:$0x1]
  %v1011 = vld [vmem:[%s440] sm:$0xff]
  %v1012 = vld [vmem:[%s440 + $0x8] sm:$0xff]
  %v1013 = vld [vmem:[%s440 + $0x10] sm:$0xff]
  %v1014 = vld [vmem:[%s440 + $0x18] sm:$0xff]
  %v1015 = vld [vmem:[%s440 + $0x20] sm:$0xff]
  %v1016 = vld [vmem:[%s440 + $0x28] sm:$0xff]
  %v1017 = vld [vmem:[%s440 + $0x30] sm:$0xff]
  %v1018 = vld [vmem:[%s440 + $0x38] sm:$0xff]
  %v1019 = vpack.c.bf16 %v1012, %v1011
  %v1020 = vpack.c.bf16 %v1014, %v1013
  %v1021 = vpack.c.bf16 %v1016, %v1015
  %v1022 = vpack.c.bf16 %v1018, %v1017
  %v1024 = vlaneseq
  %v1025 = vshrl.u32 %v1024, 7
  %v1026 = vsub.s32 0, %v1025
  %v1027 = vrot.slane %v1010, %v1026
  %v1033 = vunpack.c.l.b16 %v1002
  %v1034 = vunpack.c.l.b16 %v1003
  %v1035 = vunpack.c.l.b16 %v1004
  %v1036 = vunpack.c.l.b16 %v1005
  %v1037 = vpack.c.b16 %v1034, %v1033
  %v1038 = vpack.c.b16 %v1036, %v1035
  %v1042 = vsel %vm222, %v1019, 0
  %v1045 = vsel %vm222, %v1020, 0
  %v1048 = vsel %vm222, %v1021, 0
  %v1051 = vsel %vm222, %v1022, 0
  %1053 = vmatprep.subr.bf16.mxu0 0
  %1054 = vmatpush1.bf16.msra.mxu0 0
  %1055 = vmatprep.subr.bf16.mxu0 0
  %1056 = vmatpush1.bf16.msra.mxu0 0
  %1057 = vmatprep.subr.bf16.mxu0 0
  %1058 = vmatpush1.bf16.msra.mxu0 0
  %1059 = vmatprep.subr.bf16.mxu0 0
  %1060 = vmatpush1.bf16.msra.mxu0 0
  %1061 = vmatprep.subr.bf16.mxu0 0
  %1062 = vmatpush1.bf16.msra.mxu0 0
  %1063 = vmatprep.subr.bf16.mxu0 0
  %1064 = vmatpush1.bf16.msra.mxu0 0
  %1065 = vmatprep.subr.bf16.mxu0 0
  %1066 = vmatpush1.bf16.msra.mxu0 %v1038
  %1067 = vmatprep.subr.bf16.mxu0 0
  %1068 = vmatpush1.bf16.msra.mxu0 %v1037
  %1069 = vmatprep.subr.bf16.mxu0 0
  %1070 = vmatpush2.bf16.msra.mxu0 0
  %1071 = vmatprep.subr.bf16.mxu0 0
  %1072 = vmatpush2.bf16.msra.mxu0 0
  %1073 = vmatprep.subr.bf16.mxu0 0
  %1074 = vmatpush2.bf16.msra.mxu0 0
  %1075 = vmatprep.subr.bf16.mxu0 0
  %1076 = vmatpush2.bf16.msra.mxu0 0
  %1077 = vmatprep.subr.bf16.mxu0 0
  %1078 = vmatpush2.bf16.msra.mxu0 0
  %1079 = vmatprep.subr.bf16.mxu0 0
  %1080 = vmatpush2.bf16.msra.mxu0 0
  %1081 = vmatprep.subr.bf16.mxu0 0
  %1082 = vmatpush2.bf16.msra.mxu0 0
  %1083 = vmatprep.subr.bf16.mxu0 0
  %1084 = vmatpush2.bf16.msra.mxu0 0
  %1085 = vmatprep.mubr.bf16.mxu0 0
  %1086 = vmatmul.mubr.bf16.gmra.mxu0 %v1042
  %v1087 = vpop.f32.mrf.mxu0
  %v1088 = vadd.f32 %v1027, %v1087
  %v1089 = vpop.f32.mrf.mxu0
  %v1090 = vpop.f32.mrf.mxu0
  %v1091 = vadd.f32 %v1027, %v1090
  %v1092 = vpop.f32.mrf.mxu0
  %1093 = vmatprep.mubr.bf16.mxu0 0
  %1094 = vmatmul.mubr.bf16.gmra.mxu0 %v1045
  %v1095 = vpop.f32.mrf.mxu0
  %v1096 = vadd.f32 %v1027, %v1095
  %v1097 = vpop.f32.mrf.mxu0
  %v1098 = vpop.f32.mrf.mxu0
  %v1099 = vadd.f32 %v1027, %v1098
  %v1100 = vpop.f32.mrf.mxu0
  %1101 = vmatprep.mubr.bf16.mxu0 0
  %1102 = vmatmul.mubr.bf16.gmra.mxu0 %v1048
  %v1103 = vpop.f32.mrf.mxu0
  %v1104 = vadd.f32 %v1027, %v1103
  %v1105 = vpop.f32.mrf.mxu0
  %v1106 = vpop.f32.mrf.mxu0
  %v1107 = vadd.f32 %v1027, %v1106
  %v1108 = vpop.f32.mrf.mxu0
  %1109 = vmatprep.mubr.bf16.mxu0 0
  %1110 = vmatmul.mubr.bf16.gmra.mxu0 %v1051
  %v1111 = vpop.f32.mrf.mxu0
  %v1112 = vadd.f32 %v1027, %v1111
  %v1113 = vpop.f32.mrf.mxu0
  %v1114 = vpop.f32.mrf.mxu0
  %v1115 = vadd.f32 %v1027, %v1114
  %v1116 = vpop.f32.mrf.mxu0
  %1117 = vdwg.mxu0
  %1118 = vst [vmem:[#allocation3] sm:$0xff] %v1088
  %1119 = vst [vmem:[#allocation3 + $0x8] sm:$0xff] %v1091
  %1120 = vst [vmem:[#allocation3 + $0x10] sm:$0xff] %v1096
  %1121 = vst [vmem:[#allocation3 + $0x18] sm:$0xff] %v1099
  %1122 = vst [vmem:[#allocation3 + $0x20] sm:$0xff] %v1104
  %1123 = vst [vmem:[#allocation3 + $0x28] sm:$0xff] %v1107
  %1124 = vst [vmem:[#allocation3 + $0x30] sm:$0xff] %v1112
  %1125 = vst [vmem:[#allocation3 + $0x38] sm:$0xff] %v1115
  %v1126 = vld [vmem:[#allocation3] sm:$0xff]
  %v1131 = vunpack.c.l.b16 %v1006
  %v1132 = vunpack.c.l.b16 %v1007
  %v1133 = vunpack.c.l.b16 %v1008
  %v1134 = vunpack.c.l.b16 %v1009
  %v1135 = vpack.c.b16 %v1132, %v1131
  %v1136 = vpack.c.b16 %v1134, %v1133
  %1139 = vmatprep.subr.bf16.mxu0 0
  %1140 = vmatpush1.bf16.msra.mxu0 0
  %1141 = vmatprep.subr.bf16.mxu0 0
  %1142 = vmatpush1.bf16.msra.mxu0 0
  %1143 = vmatprep.subr.bf16.mxu0 0
  %1144 = vmatpush1.bf16.msra.mxu0 0
  %1145 = vmatprep.subr.bf16.mxu0 0
  %1146 = vmatpush1.bf16.msra.mxu0 0
  %1147 = vmatprep.subr.bf16.mxu0 0
  %1148 = vmatpush1.bf16.msra.mxu0 0
  %1149 = vmatprep.subr.bf16.mxu0 0
  %1150 = vmatpush1.bf16.msra.mxu0 0
  %1151 = vmatprep.subr.bf16.mxu0 0
  %1152 = vmatpush1.bf16.msra.mxu0 %v1136
  %1153 = vmatprep.subr.bf16.mxu0 0
  %1154 = vmatpush1.bf16.msra.mxu0 %v1135
  %1155 = vmatprep.subr.bf16.mxu0 0
  %1156 = vmatpush2.bf16.msra.mxu0 0
  %1157 = vmatprep.subr.bf16.mxu0 0
  %1158 = vmatpush2.bf16.msra.mxu0 0
  %1159 = vmatprep.subr.bf16.mxu0 0
  %1160 = vmatpush2.bf16.msra.mxu0 0
  %1161 = vmatprep.subr.bf16.mxu0 0
  %1162 = vmatpush2.bf16.msra.mxu0 0
  %1163 = vmatprep.subr.bf16.mxu0 0
  %1164 = vmatpush2.bf16.msra.mxu0 0
  %1165 = vmatprep.subr.bf16.mxu0 0
  %1166 = vmatpush2.bf16.msra.mxu0 0
  %1167 = vmatprep.subr.bf16.mxu0 0
  %1168 = vmatpush2.bf16.msra.mxu0 0
  %1169 = vmatprep.subr.bf16.mxu0 0
  %1170 = vmatpush2.bf16.msra.mxu0 0
  %1171 = vmatprep.mubr.bf16.mxu0 0
  %1172 = vmatmul.mubr.bf16.gmra.mxu0 %v369
  %v1173 = vpop.f32.mrf.mxu0
  %v1174 = vadd.f32 0.0, %v1173
  %v1175 = vpop.f32.mrf.mxu0
  %v1176 = vpop.f32.mrf.mxu0
  %v1177 = vpop.f32.mrf.mxu0
  %1178 = vdwg.mxu0
  %v1179 = vadd.f32 %v1126, %v1174
  %v1180 = vxor.u32 %v1179, 2147483648
  %v1181 = vmul.f32 %v1180, 1.442695
  %v1182 = vpow.pop %v1181
  %v1183 = vadd.f32 %v1182, 1.0
  %v1184 = vrcp.pop %v1183
  %v1185 = vmul.f32 1.0, %v1184
  %v1186 = vtanh.pop %v1179
  %v1187 = vmul.f32 %v1185, 0.0
  %1189 = vrot.lane.b32.xlu0 %v1186, 64
  %v1190 = vpop.permute.xlu0 %1189
  %v1192 = vmul.f32 %v1185, %v1190
  %1194 = vrot.lane.b32.xlu0 %v1192, 32
  %v1195 = vpop.permute.xlu0 %1194
  %v1197 = vadd.f32 %v1187, %v1195
  %v1198 = vtanh.pop %v1197
  %1200 = vrot.lane.b32.xlu0 %v1198, 64
  %v1201 = vpop.permute.xlu0 %1200
  %v1203 = vmul.f32 %v1185, %v1201
  %v1204 = vld [vmem:[%s442] sm:$0xff]
  %v1205 = vpack.c.bf16 %v1203, %v1203
  %1207 = vrot.lane.b32.xlu0 %v1205, 32
  %v1208 = vpop.permute.xlu0 %1207
  %v1210 = vsel %vm222, %v1208, 0
  %1212 = vmatprep.subr.bf16.mxu0 0
  %1213 = vmatpush1.bf16.msra.mxu0 0
  %1214 = vmatprep.subr.bf16.mxu0 0
  %1215 = vmatpush1.bf16.msra.mxu0 0
  %1216 = vmatprep.subr.bf16.mxu0 0
  %1217 = vmatpush1.bf16.msra.mxu0 0
  %1218 = vmatprep.subr.bf16.mxu0 0
  %1219 = vmatpush1.bf16.msra.mxu0 0
  %1220 = vmatprep.subr.bf16.mxu0 0
  %1221 = vmatpush1.bf16.msra.mxu0 0
  %1222 = vmatprep.subr.bf16.mxu0 0
  %1223 = vmatpush1.bf16.msra.mxu0 0
  %1224 = vmatprep.subr.bf16.mxu0 0
  %1225 = vmatpush1.bf16.msra.mxu0 %v1136
  %1226 = vmatprep.subr.bf16.mxu0 0
  %1227 = vmatpush1.bf16.msra.mxu0 %v1135
  %1228 = vmatprep.subr.bf16.mxu0 0
  %1229 = vmatpush2.bf16.msra.mxu0 0
  %1230 = vmatprep.subr.bf16.mxu0 0
  %1231 = vmatpush2.bf16.msra.mxu0 0
  %1232 = vmatprep.subr.bf16.mxu0 0
  %1233 = vmatpush2.bf16.msra.mxu0 0
  %1234 = vmatprep.subr.bf16.mxu0 0
  %1235 = vmatpush2.bf16.msra.mxu0 0
  %1236 = vmatprep.subr.bf16.mxu0 0
  %1237 = vmatpush2.bf16.msra.mxu0 0
  %1238 = vmatprep.subr.bf16.mxu0 0
  %1239 = vmatpush2.bf16.msra.mxu0 0
  %1240 = vmatprep.subr.bf16.mxu0 0
  %1241 = vmatpush2.bf16.msra.mxu0 0
  %1242 = vmatprep.subr.bf16.mxu0 0
  %1243 = vmatpush2.bf16.msra.mxu0 0
  %1244 = vmatprep.mubr.bf16.mxu0 0
  %1245 = vmatmul.mubr.bf16.gmra.mxu0 %v1210
  %v1246 = vpop.f32.mrf.mxu0
  %v1247 = vadd.f32 0.0, %v1246
  %v1248 = vpop.f32.mrf.mxu0
  %v1249 = vpop.f32.mrf.mxu0
  %v1250 = vpop.f32.mrf.mxu0
  %1251 = vdwg.mxu0
  %v1252 = vadd.f32 %v1204, %v1247
  %v1253 = vxor.u32 %v1252, 2147483648
  %v1254 = vmul.f32 %v1253, 1.442695
  %v1255 = vpow.pop %v1254
  %v1256 = vadd.f32 %v1255, 1.0
  %v1257 = vrcp.pop %v1256
  %v1258 = vmul.f32 1.0, %v1257
  %v1259 = vtanh.pop %v1252
  %v1260 = vmul.f32 %v1258, %v1197
  %1262 = vrot.lane.b32.xlu0 %v1259, 64
  %v1263 = vpop.permute.xlu0 %1262
  %v1265 = vmul.f32 %v1258, %v1263
  %1267 = vrot.lane.b32.xlu0 %v1265, 32
  %v1268 = vpop.permute.xlu0 %1267
  %v1270 = vadd.f32 %v1260, %v1268
  %v1271 = vtanh.pop %v1270
  %1273 = vrot.lane.b32.xlu0 %v1271, 64
  %v1274 = vpop.permute.xlu0 %1273
  %v1276 = vmul.f32 %v1258, %v1274
  %v1277 = vld [vmem:[%s522] sm:$0xff]
  %v1278 = vpack.c.bf16 %v1276, %v1276
  %1280 = vrot.lane.b32.xlu0 %v1278, 32
  %v1281 = vpop.permute.xlu0 %1280
  %v1283 = vsel %vm222, %v1281, 0
  %1285 = vmatprep.subr.bf16.mxu0 0
  %1286 = vmatpush1.bf16.msra.mxu0 0
  %1287 = vmatprep.subr.bf16.mxu0 0
  %1288 = vmatpush1.bf16.msra.mxu0 0
  %1289 = vmatprep.subr.bf16.mxu0 0
  %1290 = vmatpush1.bf16.msra.mxu0 0
  %1291 = vmatprep.subr.bf16.mxu0 0
  %1292 = vmatpush1.bf16.msra.mxu0 0
  %1293 = vmatprep.subr.bf16.mxu0 0
  %1294 = vmatpush1.bf16.msra.mxu0 0
  %1295 = vmatprep.subr.bf16.mxu0 0
  %1296 = vmatpush1.bf16.msra.mxu0 0
  %1297 = vmatprep.subr.bf16.mxu0 0
  %1298 = vmatpush1.bf16.msra.mxu0 %v1136
  %1299 = vmatprep.subr.bf16.mxu0 0
  %1300 = vmatpush1.bf16.msra.mxu0 %v1135
  %1301 = vmatprep.subr.bf16.mxu0 0
  %1302 = vmatpush2.bf16.msra.mxu0 0
  %1303 = vmatprep.subr.bf16.mxu0 0
  %1304 = vmatpush2.bf16.msra.mxu0 0
  %1305 = vmatprep.subr.bf16.mxu0 0
  %1306 = vmatpush2.bf16.msra.mxu0 0
  %1307 = vmatprep.subr.bf16.mxu0 0
  %1308 = vmatpush2.bf16.msra.mxu0 0
  %1309 = vmatprep.subr.bf16.mxu0 0
  %1310 = vmatpush2.bf16.msra.mxu0 0
  %1311 = vmatprep.subr.bf16.mxu0 0
  %1312 = vmatpush2.bf16.msra.mxu0 0
  %1313 = vmatprep.subr.bf16.mxu0 0
  %1314 = vmatpush2.bf16.msra.mxu0 0
  %1315 = vmatprep.subr.bf16.mxu0 0
  %1316 = vmatpush2.bf16.msra.mxu0 0
  %1317 = vmatprep.mubr.bf16.mxu0 0
  %1318 = vmatmul.mubr.bf16.gmra.mxu0 %v1283
  %v1319 = vpop.f32.mrf.mxu0
  %v1320 = vadd.f32 0.0, %v1319
  %v1321 = vpop.f32.mrf.mxu0
  %v1322 = vpop.f32.mrf.mxu0
  %v1323 = vpop.f32.mrf.mxu0
  %1324 = vdwg.mxu0
  %v1325 = vadd.f32 %v1277, %v1320
  %v1326 = vxor.u32 %v1325, 2147483648
  %v1327 = vmul.f32 %v1326, 1.442695
  %v1328 = vpow.pop %v1327
  %v1329 = vadd.f32 %v1328, 1.0
  %v1330 = vrcp.pop %v1329
  %v1331 = vmul.f32 1.0, %v1330
  %v1332 = vtanh.pop %v1325
  %v1333 = vmul.f32 %v1331, %v1270
  %1335 = vrot.lane.b32.xlu0 %v1332, 64
  %v1336 = vpop.permute.xlu0 %1335
  %v1338 = vmul.f32 %v1331, %v1336
  %1340 = vrot.lane.b32.xlu0 %v1338, 32
  %v1341 = vpop.permute.xlu0 %1340
  %v1343 = vadd.f32 %v1333, %v1341
  %v1344 = vtanh.pop %v1343
  %1346 = vrot.lane.b32.xlu0 %v1344, 64
  %v1347 = vpop.permute.xlu0 %1346
  %v1349 = vmul.f32 %v1331, %v1347
  %v1350 = vld [vmem:[%s602] sm:$0xff]
  %v1351 = vpack.c.bf16 %v1349, %v1349
  %1353 = vrot.lane.b32.xlu0 %v1351, 32
  %v1354 = vpop.permute.xlu0 %1353
  %v1356 = vsel %vm222, %v1354, 0
  %1358 = vmatprep.subr.bf16.mxu0 0
  %1359 = vmatpush1.bf16.msra.mxu0 0
  %1360 = vmatprep.subr.bf16.mxu0 0
  %1361 = vmatpush1.bf16.msra.mxu0 0
  %1362 = vmatprep.subr.bf16.mxu0 0
  %1363 = vmatpush1.bf16.msra.mxu0 0
  %1364 = vmatprep.subr.bf16.mxu0 0
  %1365 = vmatpush1.bf16.msra.mxu0 0
  %1366 = vmatprep.subr.bf16.mxu0 0
  %1367 = vmatpush1.bf16.msra.mxu0 0
  %1368 = vmatprep.subr.bf16.mxu0 0
  %1369 = vmatpush1.bf16.msra.mxu0 0
  %1370 = vmatprep.subr.bf16.mxu0 0
  %1371 = vmatpush1.bf16.msra.mxu0 %v1136
  %1372 = vmatprep.subr.bf16.mxu0 0
  %1373 = vmatpush1.bf16.msra.mxu0 %v1135
  %1374 = vmatprep.subr.bf16.mxu0 0
  %1375 = vmatpush2.bf16.msra.mxu0 0
  %1376 = vmatprep.subr.bf16.mxu0 0
  %1377 = vmatpush2.bf16.msra.mxu0 0
  %1378 = vmatprep.subr.bf16.mxu0 0
  %1379 = vmatpush2.bf16.msra.mxu0 0
  %1380 = vmatprep.subr.bf16.mxu0 0
  %1381 = vmatpush2.bf16.msra.mxu0 0
  %1382 = vmatprep.subr.bf16.mxu0 0
  %1383 = vmatpush2.bf16.msra.mxu0 0
  %1384 = vmatprep.subr.bf16.mxu0 0
  %1385 = vmatpush2.bf16.msra.mxu0 0
  %1386 = vmatprep.subr.bf16.mxu0 0
  %1387 = vmatpush2.bf16.msra.mxu0 0
  %1388 = vmatprep.subr.bf16.mxu0 0
  %1389 = vmatpush2.bf16.msra.mxu0 0
  %1390 = vmatprep.mubr.bf16.mxu0 0
  %1391 = vmatmul.mubr.bf16.gmra.mxu0 %v1356
  %v1392 = vpop.f32.mrf.mxu0
  %v1393 = vadd.f32 0.0, %v1392
  %v1394 = vpop.f32.mrf.mxu0
  %v1395 = vpop.f32.mrf.mxu0
  %v1396 = vpop.f32.mrf.mxu0
  %1397 = vdwg.mxu0
  %v1398 = vadd.f32 %v1350, %v1393
  %v1399 = vxor.u32 %v1398, 2147483648
  %v1400 = vmul.f32 %v1399, 1.442695
  %v1401 = vpow.pop %v1400
  %v1402 = vadd.f32 %v1401, 1.0
  %v1403 = vrcp.pop %v1402
  %v1404 = vmul.f32 1.0, %v1403
  %v1405 = vtanh.pop %v1398
  %v1406 = vmul.f32 %v1404, %v1343
  %1408 = vrot.lane.b32.xlu0 %v1405, 64
  %v1409 = vpop.permute.xlu0 %1408
  %v1411 = vmul.f32 %v1404, %v1409
  %1413 = vrot.lane.b32.xlu0 %v1411, 32
  %v1414 = vpop.permute.xlu0 %1413
  %v1416 = vadd.f32 %v1406, %v1414
  %v1417 = vtanh.pop %v1416
  %1419 = vrot.lane.b32.xlu0 %v1417, 64
  %v1420 = vpop.permute.xlu0 %1419
  %v1422 = vmul.f32 %v1404, %v1420
  %v1423 = vld [vmem:[%s682] sm:$0xff]
  %v1424 = vpack.c.bf16 %v1422, %v1422
  %1426 = vrot.lane.b32.xlu0 %v1424, 32
  %v1427 = vpop.permute.xlu0 %1426
  %v1429 = vsel %vm222, %v1427, 0
  %1431 = vmatprep.subr.bf16.mxu0 0
  %1432 = vmatpush1.bf16.msra.mxu0 0
  %1433 = vmatprep.subr.bf16.mxu0 0
  %1434 = vmatpush1.bf16.msra.mxu0 0
  %1435 = vmatprep.subr.bf16.mxu0 0
  %1436 = vmatpush1.bf16.msra.mxu0 0
  %1437 = vmatprep.subr.bf16.mxu0 0
  %1438 = vmatpush1.bf16.msra.mxu0 0
  %1439 = vmatprep.subr.bf16.mxu0 0
  %1440 = vmatpush1.bf16.msra.mxu0 0
  %1441 = vmatprep.subr.bf16.mxu0 0
  %1442 = vmatpush1.bf16.msra.mxu0 0
  %1443 = vmatprep.subr.bf16.mxu0 0
  %1444 = vmatpush1.bf16.msra.mxu0 %v1136
  %1445 = vmatprep.subr.bf16.mxu0 0
  %1446 = vmatpush1.bf16.msra.mxu0 %v1135
  %1447 = vmatprep.subr.bf16.mxu0 0
  %1448 = vmatpush2.bf16.msra.mxu0 0
  %1449 = vmatprep.subr.bf16.mxu0 0
  %1450 = vmatpush2.bf16.msra.mxu0 0
  %1451 = vmatprep.subr.bf16.mxu0 0
  %1452 = vmatpush2.bf16.msra.mxu0 0
  %1453 = vmatprep.subr.bf16.mxu0 0
  %1454 = vmatpush2.bf16.msra.mxu0 0
  %1455 = vmatprep.subr.bf16.mxu0 0
  %1456 = vmatpush2.bf16.msra.mxu0 0
  %1457 = vmatprep.subr.bf16.mxu0 0
  %1458 = vmatpush2.bf16.msra.mxu0 0
  %1459 = vmatprep.subr.bf16.mxu0 0
  %1460 = vmatpush2.bf16.msra.mxu0 0
  %1461 = vmatprep.subr.bf16.mxu0 0
  %1462 = vmatpush2.bf16.msra.mxu0 0
  %1463 = vmatprep.mubr.bf16.mxu0 0
  %1464 = vmatmul.mubr.bf16.gmra.mxu0 %v1429
  %v1465 = vpop.f32.mrf.mxu0
  %v1466 = vadd.f32 0.0, %v1465
  %v1467 = vpop.f32.mrf.mxu0
  %v1468 = vpop.f32.mrf.mxu0
  %v1469 = vpop.f32.mrf.mxu0
  %1470 = vdwg.mxu0
  %v1471 = vadd.f32 %v1423, %v1466
  %v1472 = vxor.u32 %v1471, 2147483648
  %v1473 = vmul.f32 %v1472, 1.442695
  %v1474 = vpow.pop %v1473
  %v1475 = vadd.f32 %v1474, 1.0
  %v1476 = vrcp.pop %v1475
  %v1477 = vmul.f32 1.0, %v1476
  %v1478 = vtanh.pop %v1471
  %v1479 = vmul.f32 %v1477, %v1416
  %1481 = vrot.lane.b32.xlu0 %v1478, 64
  %v1482 = vpop.permute.xlu0 %1481
  %v1484 = vmul.f32 %v1477, %v1482
  %1486 = vrot.lane.b32.xlu0 %v1484, 32
  %v1487 = vpop.permute.xlu0 %1486
  %v1489 = vadd.f32 %v1479, %v1487
  %v1490 = vtanh.pop %v1489
  %1492 = vrot.lane.b32.xlu0 %v1490, 64
  %v1493 = vpop.permute.xlu0 %1492
  %v1495 = vmul.f32 %v1477, %v1493
  %v1496 = vld [vmem:[%s762] sm:$0xff]
  %v1497 = vpack.c.bf16 %v1495, %v1495
  %1499 = vrot.lane.b32.xlu0 %v1497, 32
  %v1500 = vpop.permute.xlu0 %1499
  %v1502 = vsel %vm222, %v1500, 0
  %1504 = vmatprep.subr.bf16.mxu0 0
  %1505 = vmatpush1.bf16.msra.mxu0 0
  %1506 = vmatprep.subr.bf16.mxu0 0
  %1507 = vmatpush1.bf16.msra.mxu0 0
  %1508 = vmatprep.subr.bf16.mxu0 0
  %1509 = vmatpush1.bf16.msra.mxu0 0
  %1510 = vmatprep.subr.bf16.mxu0 0
  %1511 = vmatpush1.bf16.msra.mxu0 0
  %1512 = vmatprep.subr.bf16.mxu0 0
  %1513 = vmatpush1.bf16.msra.mxu0 0
  %1514 = vmatprep.subr.bf16.mxu0 0
  %1515 = vmatpush1.bf16.msra.mxu0 0
  %1516 = vmatprep.subr.bf16.mxu0 0
  %1517 = vmatpush1.bf16.msra.mxu0 %v1136
  %1518 = vmatprep.subr.bf16.mxu0 0
  %1519 = vmatpush1.bf16.msra.mxu0 %v1135
  %1520 = vmatprep.subr.bf16.mxu0 0
  %1521 = vmatpush2.bf16.msra.mxu0 0
  %1522 = vmatprep.subr.bf16.mxu0 0
  %1523 = vmatpush2.bf16.msra.mxu0 0
  %1524 = vmatprep.subr.bf16.mxu0 0
  %1525 = vmatpush2.bf16.msra.mxu0 0
  %1526 = vmatprep.subr.bf16.mxu0 0
  %1527 = vmatpush2.bf16.msra.mxu0 0
  %1528 = vmatprep.subr.bf16.mxu0 0
  %1529 = vmatpush2.bf16.msra.mxu0 0
  %1530 = vmatprep.subr.bf16.mxu0 0
  %1531 = vmatpush2.bf16.msra.mxu0 0
  %1532 = vmatprep.subr.bf16.mxu0 0
  %1533 = vmatpush2.bf16.msra.mxu0 0
  %1534 = vmatprep.subr.bf16.mxu0 0
  %1535 = vmatpush2.bf16.msra.mxu0 0
  %1536 = vmatprep.mubr.bf16.mxu0 0
  %1537 = vmatmul.mubr.bf16.gmra.mxu0 %v1502
  %v1538 = vpop.f32.mrf.mxu0
  %v1539 = vadd.f32 0.0, %v1538
  %v1540 = vpop.f32.mrf.mxu0
  %v1541 = vpop.f32.mrf.mxu0
  %v1542 = vpop.f32.mrf.mxu0
  %1543 = vdwg.mxu0
  %v1544 = vadd.f32 %v1496, %v1539
  %v1545 = vxor.u32 %v1544, 2147483648
  %v1546 = vmul.f32 %v1545, 1.442695
  %v1547 = vpow.pop %v1546
  %v1548 = vadd.f32 %v1547, 1.0
  %v1549 = vrcp.pop %v1548
  %v1550 = vmul.f32 1.0, %v1549
  %v1551 = vtanh.pop %v1544
  %v1552 = vmul.f32 %v1550, %v1489
  %1554 = vrot.lane.b32.xlu0 %v1551, 64
  %v1555 = vpop.permute.xlu0 %1554
  %v1557 = vmul.f32 %v1550, %v1555
  %1559 = vrot.lane.b32.xlu0 %v1557, 32
  %v1560 = vpop.permute.xlu0 %1559
  %v1562 = vadd.f32 %v1552, %v1560
  %v1563 = vtanh.pop %v1562
  %1565 = vrot.lane.b32.xlu0 %v1563, 64
  %v1566 = vpop.permute.xlu0 %1565
  %v1568 = vmul.f32 %v1550, %v1566
  %v1569 = vld [vmem:[%s842] sm:$0xff]
  %v1570 = vpack.c.bf16 %v1568, %v1568
  %1572 = vrot.lane.b32.xlu0 %v1570, 32
  %v1573 = vpop.permute.xlu0 %1572
  %v1575 = vsel %vm222, %v1573, 0
  %1577 = vmatprep.subr.bf16.mxu0 0
  %1578 = vmatpush1.bf16.msra.mxu0 0
  %1579 = vmatprep.subr.bf16.mxu0 0
  %1580 = vmatpush1.bf16.msra.mxu0 0
  %1581 = vmatprep.subr.bf16.mxu0 0
  %1582 = vmatpush1.bf16.msra.mxu0 0
  %1583 = vmatprep.subr.bf16.mxu0 0
  %1584 = vmatpush1.bf16.msra.mxu0 0
  %1585 = vmatprep.subr.bf16.mxu0 0
  %1586 = vmatpush1.bf16.msra.mxu0 0
  %1587 = vmatprep.subr.bf16.mxu0 0
  %1588 = vmatpush1.bf16.msra.mxu0 0
  %1589 = vmatprep.subr.bf16.mxu0 0
  %1590 = vmatpush1.bf16.msra.mxu0 %v1136
  %1591 = vmatprep.subr.bf16.mxu0 0
  %1592 = vmatpush1.bf16.msra.mxu0 %v1135
  %1593 = vmatprep.subr.bf16.mxu0 0
  %1594 = vmatpush2.bf16.msra.mxu0 0
  %1595 = vmatprep.subr.bf16.mxu0 0
  %1596 = vmatpush2.bf16.msra.mxu0 0
  %1597 = vmatprep.subr.bf16.mxu0 0
  %1598 = vmatpush2.bf16.msra.mxu0 0
  %1599 = vmatprep.subr.bf16.mxu0 0
  %1600 = vmatpush2.bf16.msra.mxu0 0
  %1601 = vmatprep.subr.bf16.mxu0 0
  %1602 = vmatpush2.bf16.msra.mxu0 0
  %1603 = vmatprep.subr.bf16.mxu0 0
  %1604 = vmatpush2.bf16.msra.mxu0 0
  %1605 = vmatprep.subr.bf16.mxu0 0
  %1606 = vmatpush2.bf16.msra.mxu0 0
  %1607 = vmatprep.subr.bf16.mxu0 0
  %1608 = vmatpush2.bf16.msra.mxu0 0
  %1609 = vmatprep.mubr.bf16.mxu0 0
  %1610 = vmatmul.mubr.bf16.gmra.mxu0 %v1575
  %v1611 = vpop.f32.mrf.mxu0
  %v1612 = vadd.f32 0.0, %v1611
  %v1613 = vpop.f32.mrf.mxu0
  %v1614 = vpop.f32.mrf.mxu0
  %v1615 = vpop.f32.mrf.mxu0
  %1616 = vdwg.mxu0
  %v1617 = vadd.f32 %v1569, %v1612
  %v1618 = vxor.u32 %v1617, 2147483648
  %v1619 = vmul.f32 %v1618, 1.442695
  %v1620 = vpow.pop %v1619
  %v1621 = vadd.f32 %v1620, 1.0
  %v1622 = vrcp.pop %v1621
  %v1623 = vmul.f32 1.0, %v1622
  %v1624 = vtanh.pop %v1617
  %v1625 = vmul.f32 %v1623, %v1562
  %1627 = vrot.lane.b32.xlu0 %v1624, 64
  %v1628 = vpop.permute.xlu0 %1627
  %v1630 = vmul.f32 %v1623, %v1628
  %1632 = vrot.lane.b32.xlu0 %v1630, 32
  %v1633 = vpop.permute.xlu0 %1632
  %v1635 = vadd.f32 %v1625, %v1633
  %v1636 = vtanh.pop %v1635
  %1638 = vrot.lane.b32.xlu0 %v1636, 64
  %v1639 = vpop.permute.xlu0 %1638
  %v1641 = vmul.f32 %v1623, %v1639
  %v1642 = vld [vmem:[%s922] sm:$0xff]
  %v1643 = vpack.c.bf16 %v1641, %v1641
  %1645 = vrot.lane.b32.xlu0 %v1643, 32
  %v1646 = vpop.permute.xlu0 %1645
  %v1648 = vsel %vm222, %v1646, 0
  %1650 = vmatprep.subr.bf16.mxu0 0
  %1651 = vmatpush1.bf16.msra.mxu0 0
  %1652 = vmatprep.subr.bf16.mxu0 0
  %1653 = vmatpush1.bf16.msra.mxu0 0
  %1654 = vmatprep.subr.bf16.mxu0 0
  %1655 = vmatpush1.bf16.msra.mxu0 0
  %1656 = vmatprep.subr.bf16.mxu0 0
  %1657 = vmatpush1.bf16.msra.mxu0 0
  %1658 = vmatprep.subr.bf16.mxu0 0
  %1659 = vmatpush1.bf16.msra.mxu0 0
  %1660 = vmatprep.subr.bf16.mxu0 0
  %1661 = vmatpush1.bf16.msra.mxu0 0
  %1662 = vmatprep.subr.bf16.mxu0 0
  %1663 = vmatpush1.bf16.msra.mxu0 %v1136
  %1664 = vmatprep.subr.bf16.mxu0 0
  %1665 = vmatpush1.bf16.msra.mxu0 %v1135
  %1666 = vmatprep.subr.bf16.mxu0 0
  %1667 = vmatpush2.bf16.msra.mxu0 0
  %1668 = vmatprep.subr.bf16.mxu0 0
  %1669 = vmatpush2.bf16.msra.mxu0 0
  %1670 = vmatprep.subr.bf16.mxu0 0
  %1671 = vmatpush2.bf16.msra.mxu0 0
  %1672 = vmatprep.subr.bf16.mxu0 0
  %1673 = vmatpush2.bf16.msra.mxu0 0
  %1674 = vmatprep.subr.bf16.mxu0 0
  %1675 = vmatpush2.bf16.msra.mxu0 0
  %1676 = vmatprep.subr.bf16.mxu0 0
  %1677 = vmatpush2.bf16.msra.mxu0 0
  %1678 = vmatprep.subr.bf16.mxu0 0
  %1679 = vmatpush2.bf16.msra.mxu0 0
  %1680 = vmatprep.subr.bf16.mxu0 0
  %1681 = vmatpush2.bf16.msra.mxu0 0
  %1682 = vmatprep.mubr.bf16.mxu0 0
  %1683 = vmatmul.mubr.bf16.gmra.mxu0 %v1648
  %v1684 = vpop.f32.mrf.mxu0
  %v1685 = vadd.f32 0.0, %v1684
  %v1686 = vpop.f32.mrf.mxu0
  %v1687 = vpop.f32.mrf.mxu0
  %v1688 = vpop.f32.mrf.mxu0
  %1689 = vdwg.mxu0
  %v1690 = vadd.f32 %v1642, %v1685
  %v1691 = vxor.u32 %v1690, 2147483648
  %v1692 = vmul.f32 %v1691, 1.442695
  %v1693 = vpow.pop %v1692
  %v1694 = vadd.f32 %v1693, 1.0
  %v1695 = vrcp.pop %v1694
  %v1696 = vmul.f32 1.0, %v1695
  %v1697 = vtanh.pop %v1690
  %v1698 = vmul.f32 %v1696, %v1635
  %1700 = vrot.lane.b32.xlu0 %v1697, 64
  %v1701 = vpop.permute.xlu0 %1700
  %v1703 = vmul.f32 %v1696, %v1701
  %1705 = vrot.lane.b32.xlu0 %v1703, 32
  %v1706 = vpop.permute.xlu0 %1705
  %v1708 = vadd.f32 %v1698, %v1706
  %v1709 = vtanh.pop %v1708
  %1711 = vrot.lane.b32.xlu0 %v1709, 64
  %v1712 = vpop.permute.xlu0 %1711
  %v1714 = vmul.f32 %v1696, %v1712
  %v1715 = vpack.c.bf16 %v1714, %v1714
  %v1716 = vld [vmem:[%s9] sm:$0xf]
  %v1717 = vld [vmem:[%s9 + $0x4] sm:$0xf]
  %v1718 = vld [vmem:[%s9 + $0x8] sm:$0xf]
  %v1719 = vld [vmem:[%s9 + $0xc] sm:$0xf]
  %v1720 = vld [vmem:[%s10] sm:$0x1]
  %v1722 = vlaneseq
  %v1723 = vshrl.u32 %v1722, 7
  %v1724 = vsub.s32 0, %v1723
  %v1725 = vrot.slane %v1720, %v1724
  %1728 = vrot.lane.b32.xlu0 %v1715, 32
  %v1729 = vpop.permute.xlu0 %1728
  %v1734 = vunpack.c.l.b16 %v1716
  %v1735 = vunpack.c.l.b16 %v1717
  %v1736 = vunpack.c.l.b16 %v1718
  %v1737 = vunpack.c.l.b16 %v1719
  %v1738 = vpack.c.b16 %v1735, %v1734
  %v1739 = vpack.c.b16 %v1737, %v1736
  %v1743 = vsel %vm222, %v1729, 0
  %1745 = vmatprep.subr.bf16.mxu0 0
  %1746 = vmatpush1.bf16.msra.mxu0 0
  %1747 = vmatprep.subr.bf16.mxu0 0
  %1748 = vmatpush1.bf16.msra.mxu0 0
  %1749 = vmatprep.subr.bf16.mxu0 0
  %1750 = vmatpush1.bf16.msra.mxu0 0
  %1751 = vmatprep.subr.bf16.mxu0 0
  %1752 = vmatpush1.bf16.msra.mxu0 0
  %1753 = vmatprep.subr.bf16.mxu0 0
  %1754 = vmatpush1.bf16.msra.mxu0 0
  %1755 = vmatprep.subr.bf16.mxu0 0
  %1756 = vmatpush1.bf16.msra.mxu0 0
  %1757 = vmatprep.subr.bf16.mxu0 0
  %1758 = vmatpush1.bf16.msra.mxu0 %v1739
  %1759 = vmatprep.subr.bf16.mxu0 0
  %1760 = vmatpush1.bf16.msra.mxu0 %v1738
  %1761 = vmatprep.subr.bf16.mxu0 0
  %1762 = vmatpush2.bf16.msra.mxu0 0
  %1763 = vmatprep.subr.bf16.mxu0 0
  %1764 = vmatpush2.bf16.msra.mxu0 0
  %1765 = vmatprep.subr.bf16.mxu0 0
  %1766 = vmatpush2.bf16.msra.mxu0 0
  %1767 = vmatprep.subr.bf16.mxu0 0
  %1768 = vmatpush2.bf16.msra.mxu0 0
  %1769 = vmatprep.subr.bf16.mxu0 0
  %1770 = vmatpush2.bf16.msra.mxu0 0
  %1771 = vmatprep.subr.bf16.mxu0 0
  %1772 = vmatpush2.bf16.msra.mxu0 0
  %1773 = vmatprep.subr.bf16.mxu0 0
  %1774 = vmatpush2.bf16.msra.mxu0 0
  %1775 = vmatprep.subr.bf16.mxu0 0
  %1776 = vmatpush2.bf16.msra.mxu0 0
  %1777 = vmatprep.mubr.bf16.mxu0 0
  %1778 = vmatmul.mubr.bf16.gmra.mxu0 %v1743
  %v1779 = vpop.f32.mrf.mxu0
  %v1780 = vadd.f32 %v1725, %v1779
  %v1781 = vpop.f32.mrf.mxu0
  %v1782 = vpop.f32.mrf.mxu0
  %v1783 = vpop.f32.mrf.mxu0
  %1784 = vdwg.mxu0
  %v1785 = vmax.f32 %v1780, 0.0
  %1786 = vst.msk [vmem:[%s11] sm:$0xff] %vm52, %v1785
  // Predicated region
  $region46: #{conv_lstm_forward.1} parent=0 // pred_check
    _
  $region47: #{conv_lstm_forward.1} parent=0 // pred_check_branch
    %1788 = sbr.rel (0) target = $region49
  $region48: #{conv_lstm_forward.1} parent=0 // pred_region
    _
  $region49: #{conv_lstm_forward.1} parent=0 // pred_fallthru
    _
  // Predicated region
  $region50: #{conv_lstm_forward.1} parent=0 // pred_check
    _
  $region51: #{conv_lstm_forward.1} parent=0 // pred_check_branch
    %1790 = sbr.rel (0) target = $region53
  $region52: #{conv_lstm_forward.1} parent=0 // pred_region
    _
  $region53: #{conv_lstm_forward.1} parent=0 // pred_fallthru
    _

</llo_original>
